<compile_context>
chip_gen: v7x
topology: tpu7x:2x2x1
jax: 0.10.0
libtpu: 0.0.40
codegen_flags: <defaults>
</compile_context>

<pallas_src>
import numpy as np
import jax
import jax.numpy as jnp
from jax.experimental import pallas as pl
from jax.experimental.pallas import tpu as pltpu


def _cdiv(a, b):
    return (a + b - 1) // b


def _round_up(a, b):
    return _cdiv(a, b) * b


def _pick_block(m, max_block, target_steps=8):
    """Lane-tile size: multiple of 128, aiming for >=target_steps grid steps
    (so v7x megacore + pipelining engage), capped at max_block for big M."""
    mb = _round_up(_cdiv(m, target_steps), 128)
    return max(128, min(max_block, mb))


# ----------------------------------------------------------------------------
# Pallas kernels
# ----------------------------------------------------------------------------
def conv_relu_pool_kernel(p_ref, w_ref, b_ref, o_ref):
    """Fused conv-as-matmul + bias + ReLU + 2x2 maxpool for one M tile.

    p_ref: (4, K, MB)  4 pool offsets, K = C_in*3*3 on sublanes,
                       M = pooled_position * batch lane-dense
    w_ref: (C, K)      conv weight (PyTorch OIHW flattened), VMEM resident
    b_ref: (C, 1)      bias (f32), broadcast along lanes
    o_ref: (C, MB)     output tile, stored in compute dtype (bf16 by default)
    """
    w = w_ref[...]
    # Max over the 4 pool offsets of the raw conv accumulators; bias-add and
    # ReLU hoisted out of the reduction (monotonic ops).
    acc = jnp.dot(w, p_ref[0], preferred_element_type=jnp.float32)
    for a in range(1, 4):              # static unroll; each dot is (C,K)@(K,MB)
        acc = jnp.maximum(
            acc, jnp.dot(w, p_ref[a], preferred_element_type=jnp.float32))
    o_ref[...] = jnp.maximum(acc + b_ref[...], 0.0).astype(o_ref.dtype)


def fc_kernel(w_ref, x_ref, b_ref, o_ref):
    """Transposed FC: o(O_pad, NB) = w(O_pad, K) @ x(K, NB) + b(O_pad, 1)."""
    o_ref[...] = (
        jnp.dot(w_ref[...], x_ref[...], preferred_element_type=jnp.float32)
        + b_ref[...]
    ).astype(o_ref.dtype)


# ----------------------------------------------------------------------------
# pallas_call wrappers
# ----------------------------------------------------------------------------
_COMPILER_PARAMS = pltpu.CompilerParams(
    dimension_semantics=("parallel",),     # M tiles shard across TensorCores
    vmem_limit_bytes=32 * 1024 * 1024,     # <=~19 MB used; v7x(64 MiB)-safe
)


def conv_relu_pool(patches, w_ck, bias, *, m_block=8192,
                   compute_dtype=jnp.bfloat16):
    """patches: (4, K, M) -> (C, M) = relu(maxpool2(conv(x))), channels-first."""
    _, k, m = patches.shape
    c = w_ck.shape[0]
    mb = _pick_block(m, m_block)
    mp = _round_up(m, mb)
    patches = jnp.pad(patches.astype(compute_dtype),
                      ((0, 0), (0, 0), (0, mp - m)))
    out = pl.pallas_call(
        conv_relu_pool_kernel,
        out_shape=jax.ShapeDtypeStruct((c, mp), compute_dtype),
        grid=(mp // mb,),
        in_specs=[
            pl.BlockSpec((4, k, mb), lambda i: (0, 0, i)),
            pl.BlockSpec((c, k), lambda i: (0, 0)),
            pl.BlockSpec((c, 1), lambda i: (0, 0)),
        ],
        out_specs=pl.BlockSpec((c, mb), lambda i: (0, i)),
        compiler_params=_COMPILER_PARAMS,
    )(patches, w_ck.astype(compute_dtype),
      bias.reshape(c, 1).astype(jnp.float32))
    return out[:, :m]


def fc_transposed(flat, w_oi, bias, *, n_block=2048, compute_dtype=jnp.bfloat16):
    """flat: (K, N) channels-first features; w_oi: (O, K); bias: (O,) -> (N, O)."""
    k, n = flat.shape
    o = w_oi.shape[0]
    o_pad = _round_up(o, 8)              # 10 -> 16 output sublanes
    nb = _pick_block(n, n_block)
    n_pad = _round_up(n, nb)
    x_p = jnp.pad(flat.astype(compute_dtype), ((0, 0), (0, n_pad - n)))
    w_p = jnp.pad(w_oi, ((0, o_pad - o), (0, 0))).astype(compute_dtype)
    b_p = jnp.pad(bias, (0, o_pad - o)).reshape(o_pad, 1).astype(jnp.float32)
    out = pl.pallas_call(
        fc_kernel,
        out_shape=jax.ShapeDtypeStruct((o_pad, n_pad), jnp.float32),
        grid=(n_pad // nb,),
        in_specs=[
            pl.BlockSpec((o_pad, k), lambda i: (0, 0)),
            pl.BlockSpec((k, nb), lambda i: (0, i)),
            pl.BlockSpec((o_pad, 1), lambda i: (0, 0)),
        ],
        out_specs=pl.BlockSpec((o_pad, nb), lambda i: (0, i)),
        compiler_params=_COMPILER_PARAMS,
    )(w_p, x_p, b_p)
    return out[:o, :n].T                 # (N, O) logits, f32


# ----------------------------------------------------------------------------
# im2col glue: static strided slices (no gather), channels-first, batch-last
# ----------------------------------------------------------------------------
def extract_patches(x_chwn, pooled_hw):
    """(C, H, W, N) -> (4, C*9, pooled_hw^2 * N).

    K is ordered (c, kh, kw) to match PyTorch OIHW weight flattening; M is
    ordered (oh, ow, n), so stage outputs reshape back to (C, PH, PW, N) and
    the final features to (C*25, N) without any XLA transpose.
    TODO(synk): fold this strided extraction into the conv kernel (needs an
    in-kernel stride-2 relayout of pooled positions onto the lane axis).
    """
    c, _, _, n = x_chwn.shape
    ph = pw = pooled_hw
    views = []
    for pi in range(2):
        for pj in range(2):
            taps = []
            for kh in range(3):
                for kw in range(3):
                    sub = x_chwn[:, pi + kh::2, pj + kw::2, :][:, :ph, :pw, :]
                    taps.append(sub)                      # (C, ph, pw, N)
            t = jnp.stack(taps, axis=1)                   # (C, 9, ph, pw, N)
            views.append(t.reshape(c * 9, ph * pw * n))   # row-major merge
    return jnp.stack(views, axis=0)                       # (4, C*9, ph*pw*N)


# ----------------------------------------------------------------------------
# Full forward pass (matches PyTorch PureCNN.forward)
# ----------------------------------------------------------------------------
def pure_cnn_forward(x, params, compute_dtype=jnp.bfloat16):
    """x: (N, 1, 28, 28) -> logits (N, 10)."""
    w1, b1, w2, b2, wf, bf = params
    n = x.shape[0]
    x_chwn = jnp.transpose(x, (1, 2, 3, 0)).astype(compute_dtype)  # (1,28,28,N)
    # stage 1: conv1(1->8,3x3) + ReLU + maxpool2 -> (8, 13*13*N)
    a1 = conv_relu_pool(extract_patches(x_chwn, 13), w1.reshape(8, 9), b1,
                        compute_dtype=compute_dtype)
    # stage 2: conv2(8->16,3x3) + ReLU + maxpool2 -> (16, 5*5*N)
    a2 = conv_relu_pool(extract_patches(a1.reshape(8, 13, 13, n), 5),
                        w2.reshape(16, 72), b2, compute_dtype=compute_dtype)
    # flatten in PyTorch (C, H, W) feature order -> (400, N); FC -> (N, 10)
    return fc_transposed(a2.reshape(16 * 5 * 5, n), wf, bf,
                         compute_dtype=compute_dtype)


# ----------------------------------------------------------------------------
# Pure-JAX reference (correctness check)
# ----------------------------------------------------------------------------
def reference_forward(x, params):
    w1, b1, w2, b2, wf, bf = params

    def conv(x, w, b):
        y = jax.lax.conv_general_dilated(
            x, w, (1, 1), "VALID", dimension_numbers=("NCHW", "OIHW", "NCHW"))
        return y + b[None, :, None, None]

    def maxpool2(x):
        return jax.lax.reduce_window(
            x, -jnp.inf, jax.lax.max, (1, 1, 2, 2), (1, 1, 2, 2), "VALID")

    y = maxpool2(jnp.maximum(conv(x, w1, b1), 0.0))
    y = maxpool2(jnp.maximum(conv(y, w2, b2), 0.0))
    y = y.reshape(y.shape[0], -1)
    return y @ wf.T + bf


def init_params(key):
    ks = jax.random.split(key, 6)

    def u(k, shape, fan_in):
        bound = 1.0 / np.sqrt(fan_in)
        return jax.random.uniform(k, shape, jnp.float32, -bound, bound)

    w1 = u(ks[0], (8, 1, 3, 3), 9)
    b1 = u(ks[1], (8,), 9)
    w2 = u(ks[2], (16, 8, 3, 3), 72)
    b2 = u(ks[3], (16,), 72)
    wf = u(ks[4], (10, 400), 400)
    bf = u(ks[5], (10,), 400)
    return (w1, b1, w2, b2, wf, bf)


if __name__ == "__main__":
    key = jax.random.PRNGKey(0)
    kx, kp = jax.random.split(key)
    # fc expects 16*5*5 features => input spatial must be 28x28 (MNIST-style).
    x = jax.random.normal(kx, (2, 1, 28, 28), jnp.float32)
    params = init_params(kp)

    ref = jax.block_until_ready(reference_forward(x, params))

    # Bit-faithful f32 mode: tight check against the XLA reference.
    out_f32 = jax.block_until_ready(
        jax.jit(lambda xx, pp: pure_cnn_forward(xx, pp, jnp.float32))(x, params))
    assert out_f32.shape == (2, 10), out_f32.shape
    np.testing.assert_allclose(np.asarray(out_f32), np.asarray(ref),
                               atol=1e-4, rtol=1e-4)

    # Default perf mode (bf16 streams, f32 accumulation): loose check -- the
    # difference is bf16 input/weight rounding, not a kernel approximation.
    out_bf16 = jax.block_until_ready(
        jax.jit(lambda xx, pp: pure_cnn_forward(xx, pp))(x, params))
    assert out_bf16.shape == (2, 10), out_bf16.shape
    np.testing.assert_allclose(np.asarray(out_bf16), np.asarray(ref),
                               atol=3e-1, rtol=1e-1)

    print("KERNEL_OK")
</pallas_src>

<mosaic_0001>
module attributes {stable_mosaic.version = 11 : i64} {
  func.func @conv_relu_pool_kernel(%arg0: i32, %arg1: memref<4x9x128xf32, #tpu.memory_space<vmem>>, %arg2: memref<8x9xf32, #tpu.memory_space<vmem>>, %arg3: memref<8x1xf32, #tpu.memory_space<vmem>>, %arg4: memref<8x128xf32, #tpu.memory_space<vmem>>) attributes {dimension_semantics = [#tpu.dimension_semantics<parallel>], iteration_bounds = array<i64: 3>, scalar_prefetch = 0 : i64, scratch_operands = 0 : i64, tpu.core_type = #tpu.core_type<tc>, window_params = [{transform_indices = @transform_0, window_bounds = array<i64: 4, 9, 128>}, {pipeline_mode = #tpu.pipeline_mode<synchronous>, transform_indices = @transform_1, window_bounds = array<i64: 8, 9>}, {pipeline_mode = #tpu.pipeline_mode<synchronous>, transform_indices = @transform_2, window_bounds = array<i64: 8, 1>}, {transform_indices = @transform_3, window_bounds = array<i64: 8, 128>}]} {
    %c0 = arith.constant 0 : index
    %c0_0 = arith.constant 0 : index
    %0 = vector.load %arg2[%c0, %c0_0] : memref<8x9xf32, #tpu.memory_space<vmem>>, vector<8x9xf32>
    %c0_1 = arith.constant 0 : index
    %c0_2 = arith.constant 0 : index
    %c0_3 = arith.constant 0 : index
    %1 = vector.load %arg1[%c0_1, %c0_2, %c0_3] : memref<4x9x128xf32, #tpu.memory_space<vmem>>, vector<1x9x128xf32>
    %2 = vector.shape_cast %1 : vector<1x9x128xf32> to vector<9x128xf32>
    %cst = arith.constant dense<0.000000e+00> : vector<8x128xf32>
    %3 = tpu.matmul %0, %2, %cst {dimension_numbers = #tpu.dot_dimension_numbers<[1], [0], [0], [1], [0, 0, 1, 1], [], []>} : vector<8x9xf32>, vector<9x128xf32>, vector<8x128xf32> -> vector<8x128xf32>
    %c1 = arith.constant 1 : index
    %c0_4 = arith.constant 0 : index
    %c0_5 = arith.constant 0 : index
    %4 = vector.load %arg1[%c1, %c0_4, %c0_5] : memref<4x9x128xf32, #tpu.memory_space<vmem>>, vector<1x9x128xf32>
    %5 = vector.shape_cast %4 : vector<1x9x128xf32> to vector<9x128xf32>
    %cst_6 = arith.constant dense<0.000000e+00> : vector<8x128xf32>
    %6 = tpu.matmul %0, %5, %cst_6 {dimension_numbers = #tpu.dot_dimension_numbers<[1], [0], [0], [1], [0, 0, 1, 1], [], []>} : vector<8x9xf32>, vector<9x128xf32>, vector<8x128xf32> -> vector<8x128xf32>
    %7 = arith.maximumf %3, %6 : vector<8x128xf32>
    %c2 = arith.constant 2 : index
    %c0_7 = arith.constant 0 : index
    %c0_8 = arith.constant 0 : index
    %8 = vector.load %arg1[%c2, %c0_7, %c0_8] : memref<4x9x128xf32, #tpu.memory_space<vmem>>, vector<1x9x128xf32>
    %9 = vector.shape_cast %8 : vector<1x9x128xf32> to vector<9x128xf32>
    %cst_9 = arith.constant dense<0.000000e+00> : vector<8x128xf32>
    %10 = tpu.matmul %0, %9, %cst_9 {dimension_numbers = #tpu.dot_dimension_numbers<[1], [0], [0], [1], [0, 0, 1, 1], [], []>} : vector<8x9xf32>, vector<9x128xf32>, vector<8x128xf32> -> vector<8x128xf32>
    %11 = arith.maximumf %7, %10 : vector<8x128xf32>
    %c3 = arith.constant 3 : index
    %c0_10 = arith.constant 0 : index
    %c0_11 = arith.constant 0 : index
    %12 = vector.load %arg1[%c3, %c0_10, %c0_11] : memref<4x9x128xf32, #tpu.memory_space<vmem>>, vector<1x9x128xf32>
    %13 = vector.shape_cast %12 : vector<1x9x128xf32> to vector<9x128xf32>
    %cst_12 = arith.constant dense<0.000000e+00> : vector<8x128xf32>
    %14 = tpu.matmul %0, %13, %cst_12 {dimension_numbers = #tpu.dot_dimension_numbers<[1], [0], [0], [1], [0, 0, 1, 1], [], []>} : vector<8x9xf32>, vector<9x128xf32>, vector<8x128xf32> -> vector<8x128xf32>
    %15 = arith.maximumf %11, %14 : vector<8x128xf32>
    %c0_13 = arith.constant 0 : index
    %c0_14 = arith.constant 0 : index
    %16 = vector.load %arg3[%c0_13, %c0_14] : memref<8x1xf32, #tpu.memory_space<vmem>>, vector<8x1xf32>
    %17 = vector.broadcast %16 : vector<8x1xf32> to vector<8x128xf32>
    %18 = arith.addf %15, %17 : vector<8x128xf32>
    %cst_15 = arith.constant 0.000000e+00 : f32
    %19 = vector.broadcast %cst_15 : f32 to vector<8x128xf32>
    %20 = arith.maximumf %18, %19 : vector<8x128xf32>
    %c0_16 = arith.constant 0 : index
    %c0_17 = arith.constant 0 : index
    %21 = vector.load %arg4[%c0_16, %c0_17] : memref<8x128xf32, #tpu.memory_space<vmem>>, vector<8x128xf32>
    tpu.vector_store %arg4[%c0_16, %c0_17], %20 {strides = array<i32>} : memref<8x128xf32, #tpu.memory_space<vmem>>, vector<8x128xf32>,
    return
  }
  func.func @transform_0(%arg0: i32) -> (i32, i32, i32) {
    %c0_i32 = arith.constant 0 : i32
    %c0_i32_0 = arith.constant 0 : i32
    %c0_i32_1 = arith.constant 0 : i32
    return %c0_i32, %c0_i32_0, %arg0 : i32, i32, i32
  }
  func.func @transform_1(%arg0: i32) -> (i32, i32) {
    %c0_i32 = arith.constant 0 : i32
    %c0_i32_0 = arith.constant 0 : i32
    %c0_i32_1 = arith.constant 0 : i32
    return %c0_i32, %c0_i32_0 : i32, i32
  }
  func.func @transform_2(%arg0: i32) -> (i32, i32) {
    %c0_i32 = arith.constant 0 : i32
    %c0_i32_0 = arith.constant 0 : i32
    %c0_i32_1 = arith.constant 0 : i32
    return %c0_i32, %c0_i32_0 : i32, i32
  }
  func.func @transform_3(%arg0: i32) -> (i32, i32) {
    %c0_i32 = arith.constant 0 : i32
    %c0_i32_0 = arith.constant 0 : i32
    return %c0_i32, %arg0 : i32, i32
  }
}

module attributes {stable_mosaic.version = 11 : i64} {
  func.func @conv_relu_pool_kernel(%arg0: i32, %arg1: memref<4x72x128xf32, #tpu.memory_space<vmem>>, %arg2: memref<16x72xf32, #tpu.memory_space<vmem>>, %arg3: memref<16x1xf32, #tpu.memory_space<vmem>>, %arg4: memref<16x128xf32, #tpu.memory_space<vmem>>) attributes {dimension_semantics = [#tpu.dimension_semantics<parallel>], iteration_bounds = array<i64: 1>, scalar_prefetch = 0 : i64, scratch_operands = 0 : i64, tpu.core_type = #tpu.core_type<tc>, window_params = [{transform_indices = @transform_0, window_bounds = array<i64: 4, 72, 128>}, {pipeline_mode = #tpu.pipeline_mode<synchronous>, transform_indices = @transform_1, window_bounds = array<i64: 16, 72>}, {pipeline_mode = #tpu.pipeline_mode<synchronous>, transform_indices = @transform_2, window_bounds = array<i64: 16, 1>}, {transform_indices = @transform_3, window_bounds = array<i64: 16, 128>}]} {
    %c0 = arith.constant 0 : index
    %c0_0 = arith.constant 0 : index
    %0 = vector.load %arg2[%c0, %c0_0] : memref<16x72xf32, #tpu.memory_space<vmem>>, vector<16x72xf32>
    %c0_1 = arith.constant 0 : index
    %c0_2 = arith.constant 0 : index
    %c0_3 = arith.constant 0 : index
    %1 = vector.load %arg1[%c0_1, %c0_2, %c0_3] : memref<4x72x128xf32, #tpu.memory_space<vmem>>, vector<1x72x128xf32>
    %2 = vector.shape_cast %1 : vector<1x72x128xf32> to vector<72x128xf32>
    %cst = arith.constant dense<0.000000e+00> : vector<16x128xf32>
    %3 = tpu.matmul %0, %2, %cst {dimension_numbers = #tpu.dot_dimension_numbers<[1], [0], [0], [1], [0, 0, 1, 1], [], []>} : vector<16x72xf32>, vector<72x128xf32>, vector<16x128xf32> -> vector<16x128xf32>
    %c1 = arith.constant 1 : index
    %c0_4 = arith.constant 0 : index
    %c0_5 = arith.constant 0 : index
    %4 = vector.load %arg1[%c1, %c0_4, %c0_5] : memref<4x72x128xf32, #tpu.memory_space<vmem>>, vector<1x72x128xf32>
    %5 = vector.shape_cast %4 : vector<1x72x128xf32> to vector<72x128xf32>
    %cst_6 = arith.constant dense<0.000000e+00> : vector<16x128xf32>
    %6 = tpu.matmul %0, %5, %cst_6 {dimension_numbers = #tpu.dot_dimension_numbers<[1], [0], [0], [1], [0, 0, 1, 1], [], []>} : vector<16x72xf32>, vector<72x128xf32>, vector<16x128xf32> -> vector<16x128xf32>
    %7 = arith.maximumf %3, %6 : vector<16x128xf32>
    %c2 = arith.constant 2 : index
    %c0_7 = arith.constant 0 : index
    %c0_8 = arith.constant 0 : index
    %8 = vector.load %arg1[%c2, %c0_7, %c0_8] : memref<4x72x128xf32, #tpu.memory_space<vmem>>, vector<1x72x128xf32>
    %9 = vector.shape_cast %8 : vector<1x72x128xf32> to vector<72x128xf32>
    %cst_9 = arith.constant dense<0.000000e+00> : vector<16x128xf32>
    %10 = tpu.matmul %0, %9, %cst_9 {dimension_numbers = #tpu.dot_dimension_numbers<[1], [0], [0], [1], [0, 0, 1, 1], [], []>} : vector<16x72xf32>, vector<72x128xf32>, vector<16x128xf32> -> vector<16x128xf32>
    %11 = arith.maximumf %7, %10 : vector<16x128xf32>
    %c3 = arith.constant 3 : index
    %c0_10 = arith.constant 0 : index
    %c0_11 = arith.constant 0 : index
    %12 = vector.load %arg1[%c3, %c0_10, %c0_11] : memref<4x72x128xf32, #tpu.memory_space<vmem>>, vector<1x72x128xf32>
    %13 = vector.shape_cast %12 : vector<1x72x128xf32> to vector<72x128xf32>
    %cst_12 = arith.constant dense<0.000000e+00> : vector<16x128xf32>
    %14 = tpu.matmul %0, %13, %cst_12 {dimension_numbers = #tpu.dot_dimension_numbers<[1], [0], [0], [1], [0, 0, 1, 1], [], []>} : vector<16x72xf32>, vector<72x128xf32>, vector<16x128xf32> -> vector<16x128xf32>
    %15 = arith.maximumf %11, %14 : vector<16x128xf32>
    %c0_13 = arith.constant 0 : index
    %c0_14 = arith.constant 0 : index
    %16 = vector.load %arg3[%c0_13, %c0_14] : memref<16x1xf32, #tpu.memory_space<vmem>>, vector<16x1xf32>
    %17 = vector.broadcast %16 : vector<16x1xf32> to vector<16x128xf32>
    %18 = arith.addf %15, %17 : vector<16x128xf32>
    %cst_15 = arith.constant 0.000000e+00 : f32
    %19 = vector.broadcast %cst_15 : f32 to vector<16x128xf32>
    %20 = arith.maximumf %18, %19 : vector<16x128xf32>
    %c0_16 = arith.constant 0 : index
    %c0_17 = arith.constant 0 : index
    %21 = vector.load %arg4[%c0_16, %c0_17] : memref<16x128xf32, #tpu.memory_space<vmem>>, vector<16x128xf32>
    tpu.vector_store %arg4[%c0_16, %c0_17], %20 {strides = array<i32>} : memref<16x128xf32, #tpu.memory_space<vmem>>, vector<16x128xf32>,
    return
  }
  func.func @transform_0(%arg0: i32) -> (i32, i32, i32) {
    %c0_i32 = arith.constant 0 : i32
    %c0_i32_0 = arith.constant 0 : i32
    %c0_i32_1 = arith.constant 0 : i32
    return %c0_i32, %c0_i32_0, %arg0 : i32, i32, i32
  }
  func.func @transform_1(%arg0: i32) -> (i32, i32) {
    %c0_i32 = arith.constant 0 : i32
    %c0_i32_0 = arith.constant 0 : i32
    %c0_i32_1 = arith.constant 0 : i32
    return %c0_i32, %c0_i32_0 : i32, i32
  }
  func.func @transform_2(%arg0: i32) -> (i32, i32) {
    %c0_i32 = arith.constant 0 : i32
    %c0_i32_0 = arith.constant 0 : i32
    %c0_i32_1 = arith.constant 0 : i32
    return %c0_i32, %c0_i32_0 : i32, i32
  }
  func.func @transform_3(%arg0: i32) -> (i32, i32) {
    %c0_i32 = arith.constant 0 : i32
    %c0_i32_0 = arith.constant 0 : i32
    return %c0_i32, %arg0 : i32, i32
  }
}

module attributes {stable_mosaic.version = 11 : i64} {
  func.func @fc_kernel(%arg0: i32, %arg1: memref<16x400xf32, #tpu.memory_space<vmem>>, %arg2: memref<400x128xf32, #tpu.memory_space<vmem>>, %arg3: memref<16x1xf32, #tpu.memory_space<vmem>>, %arg4: memref<16x128xf32, #tpu.memory_space<vmem>>) attributes {dimension_semantics = [#tpu.dimension_semantics<parallel>], iteration_bounds = array<i64: 1>, scalar_prefetch = 0 : i64, scratch_operands = 0 : i64, tpu.core_type = #tpu.core_type<tc>, window_params = [{pipeline_mode = #tpu.pipeline_mode<synchronous>, transform_indices = @transform_0, window_bounds = array<i64: 16, 400>}, {transform_indices = @transform_1, window_bounds = array<i64: 400, 128>}, {pipeline_mode = #tpu.pipeline_mode<synchronous>, transform_indices = @transform_2, window_bounds = array<i64: 16, 1>}, {transform_indices = @transform_3, window_bounds = array<i64: 16, 128>}]} {
    %c0 = arith.constant 0 : index
    %c0_0 = arith.constant 0 : index
    %0 = vector.load %arg1[%c0, %c0_0] : memref<16x400xf32, #tpu.memory_space<vmem>>, vector<16x400xf32>
    %c0_1 = arith.constant 0 : index
    %c0_2 = arith.constant 0 : index
    %1 = vector.load %arg2[%c0_1, %c0_2] : memref<400x128xf32, #tpu.memory_space<vmem>>, vector<400x128xf32>
    %cst = arith.constant dense<0.000000e+00> : vector<16x128xf32>
    %2 = tpu.matmul %0, %1, %cst {dimension_numbers = #tpu.dot_dimension_numbers<[1], [0], [0], [1], [0, 0, 1, 1], [], []>} : vector<16x400xf32>, vector<400x128xf32>, vector<16x128xf32> -> vector<16x128xf32>
    %c0_3 = arith.constant 0 : index
    %c0_4 = arith.constant 0 : index
    %3 = vector.load %arg3[%c0_3, %c0_4] : memref<16x1xf32, #tpu.memory_space<vmem>>, vector<16x1xf32>
    %4 = vector.broadcast %3 : vector<16x1xf32> to vector<16x128xf32>
    %5 = arith.addf %2, %4 : vector<16x128xf32>
    %c0_5 = arith.constant 0 : index
    %c0_6 = arith.constant 0 : index
    %6 = vector.load %arg4[%c0_5, %c0_6] : memref<16x128xf32, #tpu.memory_space<vmem>>, vector<16x128xf32>
    tpu.vector_store %arg4[%c0_5, %c0_6], %5 {strides = array<i32>} : memref<16x128xf32, #tpu.memory_space<vmem>>, vector<16x128xf32>,
    return
  }
  func.func @transform_0(%arg0: i32) -> (i32, i32) {
    %c0_i32 = arith.constant 0 : i32
    %c0_i32_0 = arith.constant 0 : i32
    %c0_i32_1 = arith.constant 0 : i32
    return %c0_i32, %c0_i32_0 : i32, i32
  }
  func.func @transform_1(%arg0: i32) -> (i32, i32) {
    %c0_i32 = arith.constant 0 : i32
    %c0_i32_0 = arith.constant 0 : i32
    return %c0_i32, %arg0 : i32, i32
  }
  func.func @transform_2(%arg0: i32) -> (i32, i32) {
    %c0_i32 = arith.constant 0 : i32
    %c0_i32_0 = arith.constant 0 : i32
    %c0_i32_1 = arith.constant 0 : i32
    return %c0_i32, %c0_i32_0 : i32, i32
  }
  func.func @transform_3(%arg0: i32) -> (i32, i32) {
    %c0_i32 = arith.constant 0 : i32
    %c0_i32_0 = arith.constant 0 : i32
    return %c0_i32, %arg0 : i32, i32
  }
}

</mosaic_0001>

<llo_original>
// kernel: _lambda_.3
$region0: #{_lambda_.3}
  #allocation0 [shape = 'u32[]', space=smem, size = 0x4, offset = 0x4, fixed_abs, tag = 'smem constant byte address 0x4 - core index']
  #allocation1 [shape = 'u32[144,128]{1,0:T(1,128)}', space=vmem, size = 0x12000, scoped, tag = 'internal scratch']
  %s0 = inlined_call_operand.vmem [shape: f32[4,9,384], index: 0, kind: input, shape index: {}]
  %s1 = inlined_call_operand.vmem [shape: f32[8,9], index: 1, kind: input, shape index: {}]
  %s2 = inlined_call_operand.vmem [shape: f32[8,1], index: 2, kind: input, shape index: {}]
  %s3 = inlined_call_operand.vmem [shape: f32[8,384], index: 3, kind: output, shape index: {}]
  %s4 = sld [smem:[#allocation0]]
  $region83: #{_lambda_.3} parent=0
    _
  %s6 = ssub.s32 1, %s4
  %s7 = scalar_select 0, %s6, %s4
  $region1: #{_lambda_.3} parent=0
    #allocation2 [shape = 'u8[65536]{0}', space=vmem, size = 0x10000, scoped, tag = 'input window, operand 0']
    loop: start=0, step=1, limit=5
    $region2: #{_lambda_.3} parent=1 // loop_pre_header
      _
    $region3: #{_lambda_.3} parent=1 // loop_header
      %s9 = sphi 0, %s13
      %p10 = scmp.ge.s32.totalorder %s9, 5
      %s19 = sphi 0, %s21
      %s22 = sphi 0, %s19
      %s23 = sphi 0, %s22
      %s39 = sphi 0, %s23
      %s43 = sphi 0, %s43
      %s45 = sphi 0, %s43
      %s46 = sphi 0, %s45
      %s60 = sphi 0, %s46
      %s64 = sphi 0, %s64
      %s66 = sphi 0, %s64
      %s67 = sphi 0, %s66
      %s81 = sphi 0, %s67
      %s87 = sphi 0, %s89
      %s90 = sphi 0, %s87
      %s91 = sphi 0, %s90
      %s107 = sphi 0, %s91
    $region4: #{_lambda_.3} parent=1 // loop_header_branch
      %12 = sbr.rel (%p10) target = $region8
    $region5: #{_lambda_.3} parent=1 // loop_body
      %s14 = ssub.s32 %s9, 1
      %s15 = ssub.s32 %s9, 2
      %s16 = sadd.s32 %s9, 1
      %s17 = ssub.s32 %s9, %s16
      %p18 = scmp.eq.s32.totalorder %s17, 0
      %s20 = sadd.s32 %s19, 1
      %s21 = scalar_select %p18, %s19, %s20
      %p24 = pneg %p18
      %p25 = scmp.eq.s32.totalorder %s9, 2
      %p26 = por %p24, %p25
      %p27 = scmp.ne.s32.totalorder %s19, %s22
      %p28 = scmp.eq.s32.totalorder %s9, 0
      %p29 = por %p27, %p28
      %p30 = scmp.ne.s32.totalorder %s19, %s22
      %p31 = scmp.eq.s32.totalorder %s14, 2
      %p32 = por %p30, %p31
      %p33 = scmp.ne.s32.totalorder %s22, %s23
      %p34 = scmp.eq.s32.totalorder %s14, 0
      %p35 = por %p33, %p34
      %p36 = scmp.ne.s32.totalorder %s22, %s23
      %p37 = scmp.eq.s32.totalorder %s15, 2
      %p38 = por %p36, %p37
      %p40 = scmp.ne.s32.totalorder %s23, %s39
      %p41 = scmp.eq.s32.totalorder %s15, 0
      %p42 = por %p40, %p41
      %s44 = sadd.s32 %s43, 1
      %p47 = scmp.eq.s32.totalorder %s9, 2
      %p48 = scmp.ne.s32.totalorder %s43, %s45
      %p49 = scmp.eq.s32.totalorder %s9, 0
      %p50 = por %p48, %p49
      %p51 = scmp.ne.s32.totalorder %s43, %s45
      %p52 = scmp.eq.s32.totalorder %s14, 2
      %p53 = por %p51, %p52
      %p54 = scmp.ne.s32.totalorder %s45, %s46
      %p55 = scmp.eq.s32.totalorder %s14, 0
      %p56 = por %p54, %p55
      %p57 = scmp.ne.s32.totalorder %s45, %s46
      %p58 = scmp.eq.s32.totalorder %s15, 2
      %p59 = por %p57, %p58
      %p61 = scmp.ne.s32.totalorder %s46, %s60
      %p62 = scmp.eq.s32.totalorder %s15, 0
      %p63 = por %p61, %p62
      %s65 = sadd.s32 %s64, 1
      %p68 = scmp.eq.s32.totalorder %s9, 2
      %p69 = scmp.ne.s32.totalorder %s64, %s66
      %p70 = scmp.eq.s32.totalorder %s9, 0
      %p71 = por %p69, %p70
      %p72 = scmp.ne.s32.totalorder %s64, %s66
      %p73 = scmp.eq.s32.totalorder %s14, 2
      %p74 = por %p72, %p73
      %p75 = scmp.ne.s32.totalorder %s66, %s67
      %p76 = scmp.eq.s32.totalorder %s14, 0
      %p77 = por %p75, %p76
      %p78 = scmp.ne.s32.totalorder %s66, %s67
      %p79 = scmp.eq.s32.totalorder %s15, 2
      %p80 = por %p78, %p79
      %p82 = scmp.ne.s32.totalorder %s67, %s81
      %p83 = scmp.eq.s32.totalorder %s15, 0
      %p84 = por %p82, %p83
      %s85 = ssub.s32 %s9, %s16
      %p86 = scmp.eq.s32.totalorder %s85, 0
      %s88 = sadd.s32 %s87, 1
      %s89 = scalar_select %p86, %s87, %s88
      %p92 = pneg %p86
      %p93 = scmp.eq.s32.totalorder %s9, 2
      %p94 = por %p92, %p93
      %p95 = scmp.ne.s32.totalorder %s87, %s90
      %p96 = scmp.eq.s32.totalorder %s9, 0
      %p97 = por %p95, %p96
      %p98 = scmp.ne.s32.totalorder %s87, %s90
      %p99 = scmp.eq.s32.totalorder %s14, 2
      %p100 = por %p98, %p99
      %p101 = scmp.ne.s32.totalorder %s90, %s91
      %p102 = scmp.eq.s32.totalorder %s14, 0
      %p103 = por %p101, %p102
      %p104 = scmp.ne.s32.totalorder %s90, %s91
      %p105 = scmp.eq.s32.totalorder %s15, 2
      %p106 = por %p104, %p105
      %p108 = scmp.ne.s32.totalorder %s91, %s107
      %p109 = scmp.eq.s32.totalorder %s15, 0
      %p110 = por %p108, %p109
      %p111 = scmp.le.s32.totalorder 1, %s9
      %p112 = scmp.lt.s32.totalorder %s9, 4
      %p113 = pnand %p111, %p112
      %p114 = pneg %p113
      // Predicated region
      $region9: #{_lambda_.3} parent=5 // pred_check
        _
      $region10: #{_lambda_.3} parent=5 // pred_check_branch
        %116 = sbr.rel (%p113) target = $region12
      $region11: #{_lambda_.3} parent=5 // pred_region
        %s117 = ssub.s32 %s9, 1
        // Predicated region
        $region13: #{_lambda_.3} parent=11 // pred_check
          %p118 = pneg %p56
        $region14: #{_lambda_.3} parent=11 // pred_check_branch
          %120 = sbr.rel (%p118) target = $region16
        $region15: #{_lambda_.3} parent=11 // pred_region
          _
        $region16: #{_lambda_.3} parent=11 // pred_fallthru
          _
        // Predicated region
        $region17: #{_lambda_.3} parent=11 // pred_check
          %p121 = pneg %p77
        $region18: #{_lambda_.3} parent=11 // pred_check_branch
          %123 = sbr.rel (%p121) target = $region20
        $region19: #{_lambda_.3} parent=11 // pred_region
          _
        $region20: #{_lambda_.3} parent=11 // pred_fallthru
          _
      $region12: #{_lambda_.3} parent=5 // pred_fallthru
        _
      %p124 = scmp.lt.s32.totalorder %s9, 3
      // Predicated region
      $region21: #{_lambda_.3} parent=5 // pred_check
        %p125 = pneg %p124
      $region22: #{_lambda_.3} parent=5 // pred_check_branch
        %127 = sbr.rel (%p125) target = $region24
      $region23: #{_lambda_.3} parent=5 // pred_region
        // Predicated region
        $region25: #{_lambda_.3} parent=23 // pred_check
          %p128 = pneg %p29
        $region26: #{_lambda_.3} parent=23 // pred_check_branch
          %130 = sbr.rel (%p128) target = $region28
        $region27: #{_lambda_.3} parent=23 // pred_region
          %s131 = sand.u32 %s19, 1
          %s132 = sand.u32 %s19, 1
          %s133 = smul.addr %s132, 64
          %s134 = scalar_lea.vmem [#allocation2], %s133
          %s135 = smul.addr %s9, 8
          %s136 = scalar_lea.vmem %s0, %s135
          // Predicated region
          $region29: #{_lambda_.3} parent=27 // pred_check
            _
          $region30: #{_lambda_.3} parent=27 // pred_check_branch
            %138 = sbr.rel (0) target = $region32
          $region31: #{_lambda_.3} parent=27 // pred_region
            // Predicated region
            $region33: #{_lambda_.3} parent=31 // pred_check
              _
            $region34: #{_lambda_.3} parent=31 // pred_check_branch
              %140 = sbr.rel (0) target = $region36
            $region35: #{_lambda_.3} parent=31 // pred_region
              // Predicated region
              $region48: #{_lambda_.3} parent=35 // pred_check
                _
              $region49: #{_lambda_.3} parent=35 // pred_check_branch
                %169 = sbr.rel (0) target = $region51
              $region50: #{_lambda_.3} parent=35 // pred_region
                loop: start=0, step=1, limit=1
                $region52: #{_lambda_.3} parent=50 // loop_pre_header
                  _
                $region53: #{_lambda_.3} parent=50 // loop_header
                  %s171 = sphi 0, %s175
                  %p172 = scmp.ge.s32.totalorder %s171, 1
                  %s176 = sphi %s136, %s136
                  %s177 = sphi %s134, %s134
                $region54: #{_lambda_.3} parent=50 // loop_header_branch
                  %174 = sbr.rel (%p172) target = $region58
                $region55: #{_lambda_.3} parent=50 // loop_body
                  %v178 = vld [vmem:[%s176] sm:$0xff]
                  %179 = vst [vmem:[%s177] sm:$0xff] %v178
                  %v180 = vld [vmem:[%s176 + $0x18] sm:$0xff]
                  %181 = vst [vmem:[%s177 + $0x8] sm:$0xff] %v180
                  %v182 = vld [vmem:[%s176 + $0x30] sm:$0xff]
                  %183 = vst [vmem:[%s177 + $0x10] sm:$0xff] %v182
                  %v184 = vld [vmem:[%s176 + $0x48] sm:$0xff]
                  %185 = vst [vmem:[%s177 + $0x18] sm:$0xff] %v184
                  %v186 = vld [vmem:[%s176 + $0x60] sm:$0xff]
                  %187 = vst [vmem:[%s177 + $0x20] sm:$0xff] %v186
                  %v188 = vld [vmem:[%s176 + $0x78] sm:$0xff]
                  %189 = vst [vmem:[%s177 + $0x28] sm:$0xff] %v188
                  %v190 = vld [vmem:[%s176 + $0x90] sm:$0xff]
                  %191 = vst [vmem:[%s177 + $0x30] sm:$0xff] %v190
                  %v192 = vld [vmem:[%s176 + $0xa8] sm:$0xff]
                  %193 = vst [vmem:[%s177 + $0x38] sm:$0xff] %v192
                $region56: #{_lambda_.3} parent=50 // loop_footer
                  %s175 = sadd.s32 1, %s171
                $region57: #{_lambda_.3} parent=50 // loop_footer_branch
                  %170 = sbr.rel target = $region53
                $region58: #{_lambda_.3} parent=50 // loop_exit
                  _
              $region51: #{_lambda_.3} parent=35 // pred_fallthru
                _
              // Predicated region
              $region59: #{_lambda_.3} parent=35 // pred_check
                _
              $region60: #{_lambda_.3} parent=35 // pred_check_branch
                %195 = sbr.rel target = $region62
              $region61: #{_lambda_.3} parent=35 // pred_region
                _
              $region62: #{_lambda_.3} parent=35 // pred_fallthru
                _
            $region36: #{_lambda_.3} parent=31 // pred_fallthru
              _
            // Predicated region
            $region37: #{_lambda_.3} parent=31 // pred_check
              _
            $region38: #{_lambda_.3} parent=31 // pred_check_branch
              %142 = sbr.rel target = $region40
            $region39: #{_lambda_.3} parent=31 // pred_region
              loop: start=0, step=1, limit=1
              $region41: #{_lambda_.3} parent=39 // loop_pre_header
                _
              $region42: #{_lambda_.3} parent=39 // loop_header
                %s145 = sphi 0, %s149
                %p146 = scmp.ge.s32.totalorder %s145, 1
                %s150 = sphi %s136, %s136
                %s151 = sphi %s134, %s134
              $region43: #{_lambda_.3} parent=39 // loop_header_branch
                %148 = sbr.rel (%p146) target = $region47
              $region44: #{_lambda_.3} parent=39 // loop_body
                %v152 = vld [vmem:[%s150] sm:$0xff]
                %153 = vst [vmem:[%s151] sm:$0xff] %v152
                %v154 = vld [vmem:[%s150 + $0x18] sm:$0xff]
                %155 = vst [vmem:[%s151 + $0x8] sm:$0xff] %v154
                %v156 = vld [vmem:[%s150 + $0x30] sm:$0xff]
                %157 = vst [vmem:[%s151 + $0x10] sm:$0xff] %v156
                %v158 = vld [vmem:[%s150 + $0x48] sm:$0xff]
                %159 = vst [vmem:[%s151 + $0x18] sm:$0xff] %v158
                %v160 = vld [vmem:[%s150 + $0x60] sm:$0xff]
                %161 = vst [vmem:[%s151 + $0x20] sm:$0xff] %v160
                %v162 = vld [vmem:[%s150 + $0x78] sm:$0xff]
                %163 = vst [vmem:[%s151 + $0x28] sm:$0xff] %v162
                %v164 = vld [vmem:[%s150 + $0x90] sm:$0xff]
                %165 = vst [vmem:[%s151 + $0x30] sm:$0xff] %v164
                %v166 = vld [vmem:[%s150 + $0xa8] sm:$0xff]
                %167 = vst [vmem:[%s151 + $0x38] sm:$0xff] %v166
              $region45: #{_lambda_.3} parent=39 // loop_footer
                %s149 = sadd.s32 1, %s145
              $region46: #{_lambda_.3} parent=39 // loop_footer_branch
                %144 = sbr.rel target = $region42
              $region47: #{_lambda_.3} parent=39 // loop_exit
                _
            $region40: #{_lambda_.3} parent=31 // pred_fallthru
              _
          $region32: #{_lambda_.3} parent=27 // pred_fallthru
            _
          %196 = vnop
        $region28: #{_lambda_.3} parent=23 // pred_fallthru
          _
      $region24: #{_lambda_.3} parent=5 // pred_fallthru
        _
      %p197 = scmp.le.s32.totalorder 1, %s9
      %p198 = scmp.lt.s32.totalorder %s9, 4
      %p199 = pnand %p197, %p198
      %p200 = pneg %p199
      // Predicated region
      $region63: #{_lambda_.3} parent=5 // pred_check
        _
      $region64: #{_lambda_.3} parent=5 // pred_check_branch
        %202 = sbr.rel (%p199) target = $region66
      $region65: #{_lambda_.3} parent=5 // pred_region
        %s203 = ssub.s32 %s9, 1
        %s204 = sand.u32 %s22, 1
        %s205 = sand.u32 %s22, 1
        %s206 = smul.addr %s205, 64
        %s207 = scalar_lea.vmem [#allocation2], %s206
        // Predicated region
        $region67: #{_lambda_.3} parent=65 // pred_check
          %p208 = pneg %p35
        $region68: #{_lambda_.3} parent=65 // pred_check_branch
          %210 = sbr.rel (%p208) target = $region70
        $region69: #{_lambda_.3} parent=65 // pred_region
          _
        $region70: #{_lambda_.3} parent=65 // pred_fallthru
          _
        %s211 = sand.u32 %s22, 1
        %s212 = sand.u32 %s22, 1
        %s213 = smul.addr %s212, 64
        %s214 = scalar_lea.vmem [#allocation2], %s213
        %p215 = pneg %p35
        %p216 = pneg %p32
        %p217 = pneg %p56
        %p218 = pneg %p53
        %p219 = pneg %p77
        %p220 = pneg %p74
        %p221 = pneg %p103
        %p222 = pneg %p100
        %p223 = scmp.lt.s32.totalorder %s14, 2
        %s224 = scalar_select %p223, %s14, 2
        %s225 = smul.addr %s224, 8
        %s226 = scalar_lea.vmem %s3, %s225
        %p227 = scmp.lt.s32.totalorder %s14, 2
        %s228 = scalar_select %p227, %s14, 2
        %s229 = smul.addr %s228, 8
        %s230 = scalar_lea.vmem %s3, %s229
        %v231 = vld [vmem:[%s1] sm:$0xff]
        %v232 = vld [vmem:[%s207] sm:$0xff]
        %v233 = vld [vmem:[%s207 + $0x8] sm:$0x1]
        %vm234 = vcmask 72704
        %v236 = vsel %vm234, %v231, 0
        %vm238 = vcmask 1040384
        %v240 = vsel %vm238, %v233, 0
        %242 = vmatprep.subr.mxu0 0.0
        %243 = vmatpush1.msra.mxu0 %v232
        %244 = vmatprep.subr.mxu0 0.0
        %245 = vmatpush1.msra.mxu0 %v240
        %246 = vmatprep.subr.mxu0 0.0
        %247 = vmatpush1.msra.mxu0 0.0
        %248 = vmatprep.subr.mxu0 0.0
        %249 = vmatpush1.msra.mxu0 0.0
        %250 = vmatprep.subr.mxu0 0.0
        %251 = vmatpush1.msra.mxu0 0.0
        %252 = vmatprep.subr.mxu0 0.0
        %253 = vmatpush1.msra.mxu0 0.0
        %254 = vmatprep.subr.mxu0 0.0
        %255 = vmatpush1.msra.mxu0 0.0
        %256 = vmatprep.subr.mxu0 0.0
        %257 = vmatpush1.msra.mxu0 0.0
        %258 = vmatprep.subr.mxu0 0.0
        %259 = vmatpush1.msra.mxu0 0.0
        %260 = vmatprep.subr.mxu0 0.0
        %261 = vmatpush1.msra.mxu0 0.0
        %262 = vmatprep.subr.mxu0 0.0
        %263 = vmatpush1.msra.mxu0 0.0
        %264 = vmatprep.subr.mxu0 0.0
        %265 = vmatpush1.msra.mxu0 0.0
        %266 = vmatprep.subr.mxu0 0.0
        %267 = vmatpush1.msra.mxu0 0.0
        %268 = vmatprep.subr.mxu0 0.0
        %269 = vmatpush1.msra.mxu0 0.0
        %270 = vmatprep.subr.mxu0 0.0
        %271 = vmatpush1.msra.mxu0 0.0
        %272 = vmatprep.subr.mxu0 0.0
        %273 = vmatpush1.msra.mxu0 0.0
        %274 = vmatprep.subr.mxu0 0.0
        %275 = vmatpush1.msra.mxu0 0.0
        %276 = vmatprep.subr.mxu0 0.0
        %277 = vmatpush1.msra.mxu0 0.0
        %278 = vmatprep.subr.mxu0 0.0
        %279 = vmatpush1.msra.mxu0 0.0
        %280 = vmatprep.subr.mxu0 0.0
        %281 = vmatpush1.msra.mxu0 0.0
        %282 = vmatprep.subr.mxu0 0.0
        %283 = vmatpush1.msra.mxu0 0.0
        %284 = vmatprep.subr.mxu0 0.0
        %285 = vmatpush1.msra.mxu0 0.0
        %286 = vmatprep.subr.mxu0 0.0
        %287 = vmatpush1.msra.mxu0 0.0
        %288 = vmatprep.subr.mxu0 0.0
        %289 = vmatpush1.msra.mxu0 0.0
        %290 = vmatprep.subr.mxu0 0.0
        %291 = vmatpush1.msra.mxu0 0.0
        %292 = vmatprep.subr.mxu0 0.0
        %293 = vmatpush1.msra.mxu0 0.0
        %294 = vmatprep.subr.mxu0 0.0
        %295 = vmatpush1.msra.mxu0 0.0
        %296 = vmatprep.subr.mxu0 0.0
        %297 = vmatpush1.msra.mxu0 0.0
        %298 = vmatprep.subr.mxu0 0.0
        %299 = vmatpush1.msra.mxu0 0.0
        %300 = vmatprep.subr.mxu0 0.0
        %301 = vmatpush1.msra.mxu0 0.0
        %302 = vmatprep.subr.mxu0 0.0
        %303 = vmatpush1.msra.mxu0 0.0
        %304 = vmatprep.subr.mxu0 0.0
        %305 = vmatpush1.msra.mxu0 0.0
        %306 = vmatprep.mubr.f32.mxu0 0.0
        %307 = vmatmul.mubr.f32.gmra.mrb[0].mxu0 %v236
        %v308 = vpop.f32.mrb[0].mxu0
        %v309 = vadd.f32 0.0, %v308
        %v310 = vpop.f32.mrb[0].mxu0
        %311 = vdwg.mxu0
        %s312 = scalar_lea.vmem %s207, 16 [#allocation2]
        %v313 = vld [vmem:[%s312] sm:$0xff]
        %v314 = vld [vmem:[%s312 + $0x8] sm:$0x1]
        %v316 = vsel %vm238, %v314, 0
        %318 = vmatprep.subr.mxu0 0.0
        %319 = vmatpush1.msra.mxu0 %v313
        %320 = vmatprep.subr.mxu0 0.0
        %321 = vmatpush1.msra.mxu0 %v316
        %322 = vmatprep.subr.mxu0 0.0
        %323 = vmatpush1.msra.mxu0 0.0
        %324 = vmatprep.subr.mxu0 0.0
        %325 = vmatpush1.msra.mxu0 0.0
        %326 = vmatprep.subr.mxu0 0.0
        %327 = vmatpush1.msra.mxu0 0.0
        %328 = vmatprep.subr.mxu0 0.0
        %329 = vmatpush1.msra.mxu0 0.0
        %330 = vmatprep.subr.mxu0 0.0
        %331 = vmatpush1.msra.mxu0 0.0
        %332 = vmatprep.subr.mxu0 0.0
        %333 = vmatpush1.msra.mxu0 0.0
        %334 = vmatprep.subr.mxu0 0.0
        %335 = vmatpush1.msra.mxu0 0.0
        %336 = vmatprep.subr.mxu0 0.0
        %337 = vmatpush1.msra.mxu0 0.0
        %338 = vmatprep.subr.mxu0 0.0
        %339 = vmatpush1.msra.mxu0 0.0
        %340 = vmatprep.subr.mxu0 0.0
        %341 = vmatpush1.msra.mxu0 0.0
        %342 = vmatprep.subr.mxu0 0.0
        %343 = vmatpush1.msra.mxu0 0.0
        %344 = vmatprep.subr.mxu0 0.0
        %345 = vmatpush1.msra.mxu0 0.0
        %346 = vmatprep.subr.mxu0 0.0
        %347 = vmatpush1.msra.mxu0 0.0
        %348 = vmatprep.subr.mxu0 0.0
        %349 = vmatpush1.msra.mxu0 0.0
        %350 = vmatprep.subr.mxu0 0.0
        %351 = vmatpush1.msra.mxu0 0.0
        %352 = vmatprep.subr.mxu0 0.0
        %353 = vmatpush1.msra.mxu0 0.0
        %354 = vmatprep.subr.mxu0 0.0
        %355 = vmatpush1.msra.mxu0 0.0
        %356 = vmatprep.subr.mxu0 0.0
        %357 = vmatpush1.msra.mxu0 0.0
        %358 = vmatprep.subr.mxu0 0.0
        %359 = vmatpush1.msra.mxu0 0.0
        %360 = vmatprep.subr.mxu0 0.0
        %361 = vmatpush1.msra.mxu0 0.0
        %362 = vmatprep.subr.mxu0 0.0
        %363 = vmatpush1.msra.mxu0 0.0
        %364 = vmatprep.subr.mxu0 0.0
        %365 = vmatpush1.msra.mxu0 0.0
        %366 = vmatprep.subr.mxu0 0.0
        %367 = vmatpush1.msra.mxu0 0.0
        %368 = vmatprep.subr.mxu0 0.0
        %369 = vmatpush1.msra.mxu0 0.0
        %370 = vmatprep.subr.mxu0 0.0
        %371 = vmatpush1.msra.mxu0 0.0
        %372 = vmatprep.subr.mxu0 0.0
        %373 = vmatpush1.msra.mxu0 0.0
        %374 = vmatprep.subr.mxu0 0.0
        %375 = vmatpush1.msra.mxu0 0.0
        %376 = vmatprep.subr.mxu0 0.0
        %377 = vmatpush1.msra.mxu0 0.0
        %378 = vmatprep.subr.mxu0 0.0
        %379 = vmatpush1.msra.mxu0 0.0
        %380 = vmatprep.subr.mxu0 0.0
        %381 = vmatpush1.msra.mxu0 0.0
        %382 = vmatprep.mubr.f32.mxu0 0.0
        %383 = vmatmul.mubr.f32.gmra.mrb[0].mxu0 %v236
        %v384 = vpop.f32.mrb[0].mxu0
        %v385 = vadd.f32 0.0, %v384
        %v386 = vpop.f32.mrb[0].mxu0
        %387 = vdwg.mxu0
        %v388 = vmax.f32 %v309, %v385
        %s389 = scalar_lea.vmem %s207, 32 [#allocation2]
        %v390 = vld [vmem:[%s389] sm:$0xff]
        %v391 = vld [vmem:[%s389 + $0x8] sm:$0x1]
        %v393 = vsel %vm238, %v391, 0
        %395 = vmatprep.subr.mxu0 0.0
        %396 = vmatpush1.msra.mxu0 %v390
        %397 = vmatprep.subr.mxu0 0.0
        %398 = vmatpush1.msra.mxu0 %v393
        %399 = vmatprep.subr.mxu0 0.0
        %400 = vmatpush1.msra.mxu0 0.0
        %401 = vmatprep.subr.mxu0 0.0
        %402 = vmatpush1.msra.mxu0 0.0
        %403 = vmatprep.subr.mxu0 0.0
        %404 = vmatpush1.msra.mxu0 0.0
        %405 = vmatprep.subr.mxu0 0.0
        %406 = vmatpush1.msra.mxu0 0.0
        %407 = vmatprep.subr.mxu0 0.0
        %408 = vmatpush1.msra.mxu0 0.0
        %409 = vmatprep.subr.mxu0 0.0
        %410 = vmatpush1.msra.mxu0 0.0
        %411 = vmatprep.subr.mxu0 0.0
        %412 = vmatpush1.msra.mxu0 0.0
        %413 = vmatprep.subr.mxu0 0.0
        %414 = vmatpush1.msra.mxu0 0.0
        %415 = vmatprep.subr.mxu0 0.0
        %416 = vmatpush1.msra.mxu0 0.0
        %417 = vmatprep.subr.mxu0 0.0
        %418 = vmatpush1.msra.mxu0 0.0
        %419 = vmatprep.subr.mxu0 0.0
        %420 = vmatpush1.msra.mxu0 0.0
        %421 = vmatprep.subr.mxu0 0.0
        %422 = vmatpush1.msra.mxu0 0.0
        %423 = vmatprep.subr.mxu0 0.0
        %424 = vmatpush1.msra.mxu0 0.0
        %425 = vmatprep.subr.mxu0 0.0
        %426 = vmatpush1.msra.mxu0 0.0
        %427 = vmatprep.subr.mxu0 0.0
        %428 = vmatpush1.msra.mxu0 0.0
        %429 = vmatprep.subr.mxu0 0.0
        %430 = vmatpush1.msra.mxu0 0.0
        %431 = vmatprep.subr.mxu0 0.0
        %432 = vmatpush1.msra.mxu0 0.0
        %433 = vmatprep.subr.mxu0 0.0
        %434 = vmatpush1.msra.mxu0 0.0
        %435 = vmatprep.subr.mxu0 0.0
        %436 = vmatpush1.msra.mxu0 0.0
        %437 = vmatprep.subr.mxu0 0.0
        %438 = vmatpush1.msra.mxu0 0.0
        %439 = vmatprep.subr.mxu0 0.0
        %440 = vmatpush1.msra.mxu0 0.0
        %441 = vmatprep.subr.mxu0 0.0
        %442 = vmatpush1.msra.mxu0 0.0
        %443 = vmatprep.subr.mxu0 0.0
        %444 = vmatpush1.msra.mxu0 0.0
        %445 = vmatprep.subr.mxu0 0.0
        %446 = vmatpush1.msra.mxu0 0.0
        %447 = vmatprep.subr.mxu0 0.0
        %448 = vmatpush1.msra.mxu0 0.0
        %449 = vmatprep.subr.mxu0 0.0
        %450 = vmatpush1.msra.mxu0 0.0
        %451 = vmatprep.subr.mxu0 0.0
        %452 = vmatpush1.msra.mxu0 0.0
        %453 = vmatprep.subr.mxu0 0.0
        %454 = vmatpush1.msra.mxu0 0.0
        %455 = vmatprep.subr.mxu0 0.0
        %456 = vmatpush1.msra.mxu0 0.0
        %457 = vmatprep.subr.mxu0 0.0
        %458 = vmatpush1.msra.mxu0 0.0
        %459 = vmatprep.mubr.f32.mxu0 0.0
        %460 = vmatmul.mubr.f32.gmra.mrb[0].mxu0 %v236
        %v461 = vpop.f32.mrb[0].mxu0
        %v462 = vadd.f32 0.0, %v461
        %v463 = vpop.f32.mrb[0].mxu0
        %464 = vdwg.mxu0
        %v465 = vmax.f32 %v388, %v462
        %s466 = scalar_lea.vmem %s207, 48 [#allocation2]
        %v467 = vld [vmem:[%s466] sm:$0xff]
        %v468 = vld [vmem:[%s466 + $0x8] sm:$0x1]
        %v470 = vsel %vm238, %v468, 0
        %472 = vmatprep.subr.mxu0 0.0
        %473 = vmatpush1.msra.mxu0 %v467
        %474 = vmatprep.subr.mxu0 0.0
        %475 = vmatpush1.msra.mxu0 %v470
        %476 = vmatprep.subr.mxu0 0.0
        %477 = vmatpush1.msra.mxu0 0.0
        %478 = vmatprep.subr.mxu0 0.0
        %479 = vmatpush1.msra.mxu0 0.0
        %480 = vmatprep.subr.mxu0 0.0
        %481 = vmatpush1.msra.mxu0 0.0
        %482 = vmatprep.subr.mxu0 0.0
        %483 = vmatpush1.msra.mxu0 0.0
        %484 = vmatprep.subr.mxu0 0.0
        %485 = vmatpush1.msra.mxu0 0.0
        %486 = vmatprep.subr.mxu0 0.0
        %487 = vmatpush1.msra.mxu0 0.0
        %488 = vmatprep.subr.mxu0 0.0
        %489 = vmatpush1.msra.mxu0 0.0
        %490 = vmatprep.subr.mxu0 0.0
        %491 = vmatpush1.msra.mxu0 0.0
        %492 = vmatprep.subr.mxu0 0.0
        %493 = vmatpush1.msra.mxu0 0.0
        %494 = vmatprep.subr.mxu0 0.0
        %495 = vmatpush1.msra.mxu0 0.0
        %496 = vmatprep.subr.mxu0 0.0
        %497 = vmatpush1.msra.mxu0 0.0
        %498 = vmatprep.subr.mxu0 0.0
        %499 = vmatpush1.msra.mxu0 0.0
        %500 = vmatprep.subr.mxu0 0.0
        %501 = vmatpush1.msra.mxu0 0.0
        %502 = vmatprep.subr.mxu0 0.0
        %503 = vmatpush1.msra.mxu0 0.0
        %504 = vmatprep.subr.mxu0 0.0
        %505 = vmatpush1.msra.mxu0 0.0
        %506 = vmatprep.subr.mxu0 0.0
        %507 = vmatpush1.msra.mxu0 0.0
        %508 = vmatprep.subr.mxu0 0.0
        %509 = vmatpush1.msra.mxu0 0.0
        %510 = vmatprep.subr.mxu0 0.0
        %511 = vmatpush1.msra.mxu0 0.0
        %512 = vmatprep.subr.mxu0 0.0
        %513 = vmatpush1.msra.mxu0 0.0
        %514 = vmatprep.subr.mxu0 0.0
        %515 = vmatpush1.msra.mxu0 0.0
        %516 = vmatprep.subr.mxu0 0.0
        %517 = vmatpush1.msra.mxu0 0.0
        %518 = vmatprep.subr.mxu0 0.0
        %519 = vmatpush1.msra.mxu0 0.0
        %520 = vmatprep.subr.mxu0 0.0
        %521 = vmatpush1.msra.mxu0 0.0
        %522 = vmatprep.subr.mxu0 0.0
        %523 = vmatpush1.msra.mxu0 0.0
        %524 = vmatprep.subr.mxu0 0.0
        %525 = vmatpush1.msra.mxu0 0.0
        %526 = vmatprep.subr.mxu0 0.0
        %527 = vmatpush1.msra.mxu0 0.0
        %528 = vmatprep.subr.mxu0 0.0
        %529 = vmatpush1.msra.mxu0 0.0
        %530 = vmatprep.subr.mxu0 0.0
        %531 = vmatpush1.msra.mxu0 0.0
        %532 = vmatprep.subr.mxu0 0.0
        %533 = vmatpush1.msra.mxu0 0.0
        %534 = vmatprep.subr.mxu0 0.0
        %535 = vmatpush1.msra.mxu0 0.0
        %536 = vmatprep.mubr.f32.mxu0 0.0
        %537 = vmatmul.mubr.f32.gmra.mrb[0].mxu0 %v236
        %v538 = vpop.f32.mrb[0].mxu0
        %v539 = vadd.f32 0.0, %v538
        %v540 = vpop.f32.mrb[0].mxu0
        %541 = vdwg.mxu0
        %v542 = vmax.f32 %v465, %v539
        %v543 = vld [vmem:[%s2] sm:$0xff]
        %545 = vset.pattern.permute.xlu0 0
        %546 = vperm.xlu0 %545, %v543
        %v547 = vpop.permute.xlu0 %546
        %v549 = vadd.f32 %v542, %v547
        %v550 = vmax.f32 %v549, 0.0
        %551 = vst [vmem:[%s230] sm:$0xff] %v550
        %p552 = scmp.lt.s32.totalorder %s14, 2
        %s553 = scalar_select %p552, %s14, 2
        %s554 = smul.addr %s553, 8
        %s555 = scalar_lea.vmem %s3, %s554
        // Predicated region
        $region71: #{_lambda_.3} parent=65 // pred_check
          %p556 = pneg %p100
        $region72: #{_lambda_.3} parent=65 // pred_check_branch
          %558 = sbr.rel (%p556) target = $region74
        $region73: #{_lambda_.3} parent=65 // pred_region
          _
        $region74: #{_lambda_.3} parent=65 // pred_fallthru
          _
      $region66: #{_lambda_.3} parent=5 // pred_fallthru
        _
      %p559 = scmp.le.s32.totalorder 2, %s9
      // Predicated region
      $region75: #{_lambda_.3} parent=5 // pred_check
        %p560 = pneg %p559
      $region76: #{_lambda_.3} parent=5 // pred_check_branch
        %562 = sbr.rel (%p560) target = $region78
      $region77: #{_lambda_.3} parent=5 // pred_region
        %s563 = ssub.s32 %s9, 2
        // Predicated region
        $region79: #{_lambda_.3} parent=77 // pred_check
          %p564 = pneg %p106
        $region80: #{_lambda_.3} parent=77 // pred_check_branch
          %566 = sbr.rel (%p564) target = $region82
        $region81: #{_lambda_.3} parent=77 // pred_region
          %p567 = scmp.lt.s32.totalorder %s15, 2
          %s568 = scalar_select %p567, %s15, 2
          %s569 = smul.addr %s568, 8
          %s570 = scalar_lea.vmem %s3, %s569
        $region82: #{_lambda_.3} parent=77 // pred_fallthru
          _
      $region78: #{_lambda_.3} parent=5 // pred_fallthru
        _
    $region6: #{_lambda_.3} parent=1 // loop_footer
      %s13 = sadd.s32 1, %s9
    $region7: #{_lambda_.3} parent=1 // loop_footer_branch
      %8 = sbr.rel target = $region3
    $region8: #{_lambda_.3} parent=1 // loop_exit
      _

// kernel: _lambda_.4
$region0: #{_lambda_.4}
  #allocation0 [shape = 'u32[]', space=smem, size = 0x4, offset = 0x4, fixed_abs, tag = 'smem constant byte address 0x4 - core index']
  #allocation1 [shape = 'u32[144,128]{1,0:T(1,128)}', space=vmem, size = 0x12000, scoped, tag = 'internal scratch']
  %s0 = inlined_call_operand.vmem [shape: f32[4,72,128], index: 0, kind: input, shape index: {}]
  %s1 = inlined_call_operand.vmem [shape: f32[16,72], index: 1, kind: input, shape index: {}]
  %s2 = inlined_call_operand.vmem [shape: f32[16,1], index: 2, kind: input, shape index: {}]
  %s3 = inlined_call_operand.vmem [shape: f32[16,128], index: 3, kind: output, shape index: {}]
  %s4 = sld [smem:[#allocation0]]
  $region22: #{_lambda_.4} parent=0
    _
  %s6 = ssub.s32 1, %s4
  %s7 = scalar_select 0, %s6, %s4
  // Predicated region
  $region2: #{_lambda_.4} parent=0 // pred_check
    _
  $region3: #{_lambda_.4} parent=0 // pred_check_branch
    %9 = sbr.rel (0) target = $region5
  $region4: #{_lambda_.4} parent=0 // pred_region
    _
  $region5: #{_lambda_.4} parent=0 // pred_fallthru
    _
  // Predicated region
  $region6: #{_lambda_.4} parent=0 // pred_check
    _
  $region7: #{_lambda_.4} parent=0 // pred_check_branch
    %11 = sbr.rel (0) target = $region9
  $region8: #{_lambda_.4} parent=0 // pred_region
    _
  $region9: #{_lambda_.4} parent=0 // pred_fallthru
    _
  // Predicated region
  $region10: #{_lambda_.4} parent=0 // pred_check
    _
  $region11: #{_lambda_.4} parent=0 // pred_check_branch
    %13 = sbr.rel (0) target = $region13
  $region12: #{_lambda_.4} parent=0 // pred_region
    _
  $region13: #{_lambda_.4} parent=0 // pred_fallthru
    _
  %v14 = vld [vmem:[%s1] sm:$0xff]
  %v15 = vld [vmem:[%s1 + $0x8] sm:$0xff]
  %v16 = vld [vmem:[%s0] sm:$0xff]
  %v17 = vld [vmem:[%s0 + $0x8] sm:$0xff]
  %v18 = vld [vmem:[%s0 + $0x10] sm:$0xff]
  %v19 = vld [vmem:[%s0 + $0x18] sm:$0xff]
  %v20 = vld [vmem:[%s0 + $0x20] sm:$0xff]
  %v21 = vld [vmem:[%s0 + $0x28] sm:$0xff]
  %v22 = vld [vmem:[%s0 + $0x30] sm:$0xff]
  %v23 = vld [vmem:[%s0 + $0x38] sm:$0xff]
  %v24 = vld [vmem:[%s0 + $0x40] sm:$0xff]
  %vm25 = vcmask 588800
  %v27 = vsel %vm25, %v14, 0
  %v30 = vsel %vm25, %v15, 0
  %32 = vmatprep.subr.mxu0 0.0
  %33 = vmatpush1.msra.mxu0 %v16
  %34 = vmatprep.subr.mxu0 0.0
  %35 = vmatpush1.msra.mxu0 %v17
  %36 = vmatprep.subr.mxu0 0.0
  %37 = vmatpush1.msra.mxu0 %v18
  %38 = vmatprep.subr.mxu0 0.0
  %39 = vmatpush1.msra.mxu0 %v19
  %40 = vmatprep.subr.mxu0 0.0
  %41 = vmatpush1.msra.mxu0 %v20
  %42 = vmatprep.subr.mxu0 0.0
  %43 = vmatpush1.msra.mxu0 %v21
  %44 = vmatprep.subr.mxu0 0.0
  %45 = vmatpush1.msra.mxu0 %v22
  %46 = vmatprep.subr.mxu0 0.0
  %47 = vmatpush1.msra.mxu0 %v23
  %48 = vmatprep.subr.mxu0 0.0
  %49 = vmatpush1.msra.mxu0 %v24
  %50 = vmatprep.subr.mxu0 0.0
  %51 = vmatpush1.msra.mxu0 0.0
  %52 = vmatprep.subr.mxu0 0.0
  %53 = vmatpush1.msra.mxu0 0.0
  %54 = vmatprep.subr.mxu0 0.0
  %55 = vmatpush1.msra.mxu0 0.0
  %56 = vmatprep.subr.mxu0 0.0
  %57 = vmatpush1.msra.mxu0 0.0
  %58 = vmatprep.subr.mxu0 0.0
  %59 = vmatpush1.msra.mxu0 0.0
  %60 = vmatprep.subr.mxu0 0.0
  %61 = vmatpush1.msra.mxu0 0.0
  %62 = vmatprep.subr.mxu0 0.0
  %63 = vmatpush1.msra.mxu0 0.0
  %64 = vmatprep.subr.mxu0 0.0
  %65 = vmatpush1.msra.mxu0 0.0
  %66 = vmatprep.subr.mxu0 0.0
  %67 = vmatpush1.msra.mxu0 0.0
  %68 = vmatprep.subr.mxu0 0.0
  %69 = vmatpush1.msra.mxu0 0.0
  %70 = vmatprep.subr.mxu0 0.0
  %71 = vmatpush1.msra.mxu0 0.0
  %72 = vmatprep.subr.mxu0 0.0
  %73 = vmatpush1.msra.mxu0 0.0
  %74 = vmatprep.subr.mxu0 0.0
  %75 = vmatpush1.msra.mxu0 0.0
  %76 = vmatprep.subr.mxu0 0.0
  %77 = vmatpush1.msra.mxu0 0.0
  %78 = vmatprep.subr.mxu0 0.0
  %79 = vmatpush1.msra.mxu0 0.0
  %80 = vmatprep.subr.mxu0 0.0
  %81 = vmatpush1.msra.mxu0 0.0
  %82 = vmatprep.subr.mxu0 0.0
  %83 = vmatpush1.msra.mxu0 0.0
  %84 = vmatprep.subr.mxu0 0.0
  %85 = vmatpush1.msra.mxu0 0.0
  %86 = vmatprep.subr.mxu0 0.0
  %87 = vmatpush1.msra.mxu0 0.0
  %88 = vmatprep.subr.mxu0 0.0
  %89 = vmatpush1.msra.mxu0 0.0
  %90 = vmatprep.subr.mxu0 0.0
  %91 = vmatpush1.msra.mxu0 0.0
  %92 = vmatprep.subr.mxu0 0.0
  %93 = vmatpush1.msra.mxu0 0.0
  %94 = vmatprep.subr.mxu0 0.0
  %95 = vmatpush1.msra.mxu0 0.0
  %96 = vmatprep.mubr.f32.mxu0 0.0
  %97 = vmatmul.mubr.f32.gmra.mrb[0].mxu0 %v27
  %v98 = vpop.f32.mrb[0].mxu0
  %v99 = vadd.f32 0.0, %v98
  %v100 = vpop.f32.mrb[0].mxu0
  %101 = vmatprep.mubr.f32.mxu0 0.0
  %102 = vmatmul.mubr.f32.gmra.mrb[0].mxu0 %v30
  %v103 = vpop.f32.mrb[0].mxu0
  %v104 = vadd.f32 0.0, %v103
  %v105 = vpop.f32.mrb[0].mxu0
  %106 = vdwg.mxu0
  %s107 = scalar_lea.vmem %s0, 72
  %v108 = vld [vmem:[%s107] sm:$0xff]
  %v109 = vld [vmem:[%s107 + $0x8] sm:$0xff]
  %v110 = vld [vmem:[%s107 + $0x10] sm:$0xff]
  %v111 = vld [vmem:[%s107 + $0x18] sm:$0xff]
  %v112 = vld [vmem:[%s107 + $0x20] sm:$0xff]
  %v113 = vld [vmem:[%s107 + $0x28] sm:$0xff]
  %v114 = vld [vmem:[%s107 + $0x30] sm:$0xff]
  %v115 = vld [vmem:[%s107 + $0x38] sm:$0xff]
  %v116 = vld [vmem:[%s107 + $0x40] sm:$0xff]
  %117 = vmatprep.subr.mxu0 0.0
  %118 = vmatpush1.msra.mxu0 %v108
  %119 = vmatprep.subr.mxu0 0.0
  %120 = vmatpush1.msra.mxu0 %v109
  %121 = vmatprep.subr.mxu0 0.0
  %122 = vmatpush1.msra.mxu0 %v110
  %123 = vmatprep.subr.mxu0 0.0
  %124 = vmatpush1.msra.mxu0 %v111
  %125 = vmatprep.subr.mxu0 0.0
  %126 = vmatpush1.msra.mxu0 %v112
  %127 = vmatprep.subr.mxu0 0.0
  %128 = vmatpush1.msra.mxu0 %v113
  %129 = vmatprep.subr.mxu0 0.0
  %130 = vmatpush1.msra.mxu0 %v114
  %131 = vmatprep.subr.mxu0 0.0
  %132 = vmatpush1.msra.mxu0 %v115
  %133 = vmatprep.subr.mxu0 0.0
  %134 = vmatpush1.msra.mxu0 %v116
  %135 = vmatprep.subr.mxu0 0.0
  %136 = vmatpush1.msra.mxu0 0.0
  %137 = vmatprep.subr.mxu0 0.0
  %138 = vmatpush1.msra.mxu0 0.0
  %139 = vmatprep.subr.mxu0 0.0
  %140 = vmatpush1.msra.mxu0 0.0
  %141 = vmatprep.subr.mxu0 0.0
  %142 = vmatpush1.msra.mxu0 0.0
  %143 = vmatprep.subr.mxu0 0.0
  %144 = vmatpush1.msra.mxu0 0.0
  %145 = vmatprep.subr.mxu0 0.0
  %146 = vmatpush1.msra.mxu0 0.0
  %147 = vmatprep.subr.mxu0 0.0
  %148 = vmatpush1.msra.mxu0 0.0
  %149 = vmatprep.subr.mxu0 0.0
  %150 = vmatpush1.msra.mxu0 0.0
  %151 = vmatprep.subr.mxu0 0.0
  %152 = vmatpush1.msra.mxu0 0.0
  %153 = vmatprep.subr.mxu0 0.0
  %154 = vmatpush1.msra.mxu0 0.0
  %155 = vmatprep.subr.mxu0 0.0
  %156 = vmatpush1.msra.mxu0 0.0
  %157 = vmatprep.subr.mxu0 0.0
  %158 = vmatpush1.msra.mxu0 0.0
  %159 = vmatprep.subr.mxu0 0.0
  %160 = vmatpush1.msra.mxu0 0.0
  %161 = vmatprep.subr.mxu0 0.0
  %162 = vmatpush1.msra.mxu0 0.0
  %163 = vmatprep.subr.mxu0 0.0
  %164 = vmatpush1.msra.mxu0 0.0
  %165 = vmatprep.subr.mxu0 0.0
  %166 = vmatpush1.msra.mxu0 0.0
  %167 = vmatprep.subr.mxu0 0.0
  %168 = vmatpush1.msra.mxu0 0.0
  %169 = vmatprep.subr.mxu0 0.0
  %170 = vmatpush1.msra.mxu0 0.0
  %171 = vmatprep.subr.mxu0 0.0
  %172 = vmatpush1.msra.mxu0 0.0
  %173 = vmatprep.subr.mxu0 0.0
  %174 = vmatpush1.msra.mxu0 0.0
  %175 = vmatprep.subr.mxu0 0.0
  %176 = vmatpush1.msra.mxu0 0.0
  %177 = vmatprep.subr.mxu0 0.0
  %178 = vmatpush1.msra.mxu0 0.0
  %179 = vmatprep.subr.mxu0 0.0
  %180 = vmatpush1.msra.mxu0 0.0
  %181 = vmatprep.mubr.f32.mxu0 0.0
  %182 = vmatmul.mubr.f32.gmra.mrb[0].mxu0 %v27
  %v183 = vpop.f32.mrb[0].mxu0
  %v184 = vadd.f32 0.0, %v183
  %v185 = vpop.f32.mrb[0].mxu0
  %186 = vmatprep.mubr.f32.mxu0 0.0
  %187 = vmatmul.mubr.f32.gmra.mrb[0].mxu0 %v30
  %v188 = vpop.f32.mrb[0].mxu0
  %v189 = vadd.f32 0.0, %v188
  %v190 = vpop.f32.mrb[0].mxu0
  %191 = vdwg.mxu0
  %v192 = vmax.f32 %v99, %v184
  %v193 = vmax.f32 %v104, %v189
  %s194 = scalar_lea.vmem %s0, 144
  %v195 = vld [vmem:[%s194] sm:$0xff]
  %v196 = vld [vmem:[%s194 + $0x8] sm:$0xff]
  %v197 = vld [vmem:[%s194 + $0x10] sm:$0xff]
  %v198 = vld [vmem:[%s194 + $0x18] sm:$0xff]
  %v199 = vld [vmem:[%s194 + $0x20] sm:$0xff]
  %v200 = vld [vmem:[%s194 + $0x28] sm:$0xff]
  %v201 = vld [vmem:[%s194 + $0x30] sm:$0xff]
  %v202 = vld [vmem:[%s194 + $0x38] sm:$0xff]
  %v203 = vld [vmem:[%s194 + $0x40] sm:$0xff]
  %204 = vmatprep.subr.mxu0 0.0
  %205 = vmatpush1.msra.mxu0 %v195
  %206 = vmatprep.subr.mxu0 0.0
  %207 = vmatpush1.msra.mxu0 %v196
  %208 = vmatprep.subr.mxu0 0.0
  %209 = vmatpush1.msra.mxu0 %v197
  %210 = vmatprep.subr.mxu0 0.0
  %211 = vmatpush1.msra.mxu0 %v198
  %212 = vmatprep.subr.mxu0 0.0
  %213 = vmatpush1.msra.mxu0 %v199
  %214 = vmatprep.subr.mxu0 0.0
  %215 = vmatpush1.msra.mxu0 %v200
  %216 = vmatprep.subr.mxu0 0.0
  %217 = vmatpush1.msra.mxu0 %v201
  %218 = vmatprep.subr.mxu0 0.0
  %219 = vmatpush1.msra.mxu0 %v202
  %220 = vmatprep.subr.mxu0 0.0
  %221 = vmatpush1.msra.mxu0 %v203
  %222 = vmatprep.subr.mxu0 0.0
  %223 = vmatpush1.msra.mxu0 0.0
  %224 = vmatprep.subr.mxu0 0.0
  %225 = vmatpush1.msra.mxu0 0.0
  %226 = vmatprep.subr.mxu0 0.0
  %227 = vmatpush1.msra.mxu0 0.0
  %228 = vmatprep.subr.mxu0 0.0
  %229 = vmatpush1.msra.mxu0 0.0
  %230 = vmatprep.subr.mxu0 0.0
  %231 = vmatpush1.msra.mxu0 0.0
  %232 = vmatprep.subr.mxu0 0.0
  %233 = vmatpush1.msra.mxu0 0.0
  %234 = vmatprep.subr.mxu0 0.0
  %235 = vmatpush1.msra.mxu0 0.0
  %236 = vmatprep.subr.mxu0 0.0
  %237 = vmatpush1.msra.mxu0 0.0
  %238 = vmatprep.subr.mxu0 0.0
  %239 = vmatpush1.msra.mxu0 0.0
  %240 = vmatprep.subr.mxu0 0.0
  %241 = vmatpush1.msra.mxu0 0.0
  %242 = vmatprep.subr.mxu0 0.0
  %243 = vmatpush1.msra.mxu0 0.0
  %244 = vmatprep.subr.mxu0 0.0
  %245 = vmatpush1.msra.mxu0 0.0
  %246 = vmatprep.subr.mxu0 0.0
  %247 = vmatpush1.msra.mxu0 0.0
  %248 = vmatprep.subr.mxu0 0.0
  %249 = vmatpush1.msra.mxu0 0.0
  %250 = vmatprep.subr.mxu0 0.0
  %251 = vmatpush1.msra.mxu0 0.0
  %252 = vmatprep.subr.mxu0 0.0
  %253 = vmatpush1.msra.mxu0 0.0
  %254 = vmatprep.subr.mxu0 0.0
  %255 = vmatpush1.msra.mxu0 0.0
  %256 = vmatprep.subr.mxu0 0.0
  %257 = vmatpush1.msra.mxu0 0.0
  %258 = vmatprep.subr.mxu0 0.0
  %259 = vmatpush1.msra.mxu0 0.0
  %260 = vmatprep.subr.mxu0 0.0
  %261 = vmatpush1.msra.mxu0 0.0
  %262 = vmatprep.subr.mxu0 0.0
  %263 = vmatpush1.msra.mxu0 0.0
  %264 = vmatprep.subr.mxu0 0.0
  %265 = vmatpush1.msra.mxu0 0.0
  %266 = vmatprep.subr.mxu0 0.0
  %267 = vmatpush1.msra.mxu0 0.0
  %268 = vmatprep.mubr.f32.mxu0 0.0
  %269 = vmatmul.mubr.f32.gmra.mrb[0].mxu0 %v27
  %v270 = vpop.f32.mrb[0].mxu0
  %v271 = vadd.f32 0.0, %v270
  %v272 = vpop.f32.mrb[0].mxu0
  %273 = vmatprep.mubr.f32.mxu0 0.0
  %274 = vmatmul.mubr.f32.gmra.mrb[0].mxu0 %v30
  %v275 = vpop.f32.mrb[0].mxu0
  %v276 = vadd.f32 0.0, %v275
  %v277 = vpop.f32.mrb[0].mxu0
  %278 = vdwg.mxu0
  %v279 = vmax.f32 %v192, %v271
  %v280 = vmax.f32 %v193, %v276
  %s281 = scalar_lea.vmem %s0, 216
  %v282 = vld [vmem:[%s281] sm:$0xff]
  %v283 = vld [vmem:[%s281 + $0x8] sm:$0xff]
  %v284 = vld [vmem:[%s281 + $0x10] sm:$0xff]
  %v285 = vld [vmem:[%s281 + $0x18] sm:$0xff]
  %v286 = vld [vmem:[%s281 + $0x20] sm:$0xff]
  %v287 = vld [vmem:[%s281 + $0x28] sm:$0xff]
  %v288 = vld [vmem:[%s281 + $0x30] sm:$0xff]
  %v289 = vld [vmem:[%s281 + $0x38] sm:$0xff]
  %v290 = vld [vmem:[%s281 + $0x40] sm:$0xff]
  %291 = vmatprep.subr.mxu0 0.0
  %292 = vmatpush1.msra.mxu0 %v282
  %293 = vmatprep.subr.mxu0 0.0
  %294 = vmatpush1.msra.mxu0 %v283
  %295 = vmatprep.subr.mxu0 0.0
  %296 = vmatpush1.msra.mxu0 %v284
  %297 = vmatprep.subr.mxu0 0.0
  %298 = vmatpush1.msra.mxu0 %v285
  %299 = vmatprep.subr.mxu0 0.0
  %300 = vmatpush1.msra.mxu0 %v286
  %301 = vmatprep.subr.mxu0 0.0
  %302 = vmatpush1.msra.mxu0 %v287
  %303 = vmatprep.subr.mxu0 0.0
  %304 = vmatpush1.msra.mxu0 %v288
  %305 = vmatprep.subr.mxu0 0.0
  %306 = vmatpush1.msra.mxu0 %v289
  %307 = vmatprep.subr.mxu0 0.0
  %308 = vmatpush1.msra.mxu0 %v290
  %309 = vmatprep.subr.mxu0 0.0
  %310 = vmatpush1.msra.mxu0 0.0
  %311 = vmatprep.subr.mxu0 0.0
  %312 = vmatpush1.msra.mxu0 0.0
  %313 = vmatprep.subr.mxu0 0.0
  %314 = vmatpush1.msra.mxu0 0.0
  %315 = vmatprep.subr.mxu0 0.0
  %316 = vmatpush1.msra.mxu0 0.0
  %317 = vmatprep.subr.mxu0 0.0
  %318 = vmatpush1.msra.mxu0 0.0
  %319 = vmatprep.subr.mxu0 0.0
  %320 = vmatpush1.msra.mxu0 0.0
  %321 = vmatprep.subr.mxu0 0.0
  %322 = vmatpush1.msra.mxu0 0.0
  %323 = vmatprep.subr.mxu0 0.0
  %324 = vmatpush1.msra.mxu0 0.0
  %325 = vmatprep.subr.mxu0 0.0
  %326 = vmatpush1.msra.mxu0 0.0
  %327 = vmatprep.subr.mxu0 0.0
  %328 = vmatpush1.msra.mxu0 0.0
  %329 = vmatprep.subr.mxu0 0.0
  %330 = vmatpush1.msra.mxu0 0.0
  %331 = vmatprep.subr.mxu0 0.0
  %332 = vmatpush1.msra.mxu0 0.0
  %333 = vmatprep.subr.mxu0 0.0
  %334 = vmatpush1.msra.mxu0 0.0
  %335 = vmatprep.subr.mxu0 0.0
  %336 = vmatpush1.msra.mxu0 0.0
  %337 = vmatprep.subr.mxu0 0.0
  %338 = vmatpush1.msra.mxu0 0.0
  %339 = vmatprep.subr.mxu0 0.0
  %340 = vmatpush1.msra.mxu0 0.0
  %341 = vmatprep.subr.mxu0 0.0
  %342 = vmatpush1.msra.mxu0 0.0
  %343 = vmatprep.subr.mxu0 0.0
  %344 = vmatpush1.msra.mxu0 0.0
  %345 = vmatprep.subr.mxu0 0.0
  %346 = vmatpush1.msra.mxu0 0.0
  %347 = vmatprep.subr.mxu0 0.0
  %348 = vmatpush1.msra.mxu0 0.0
  %349 = vmatprep.subr.mxu0 0.0
  %350 = vmatpush1.msra.mxu0 0.0
  %351 = vmatprep.subr.mxu0 0.0
  %352 = vmatpush1.msra.mxu0 0.0
  %353 = vmatprep.subr.mxu0 0.0
  %354 = vmatpush1.msra.mxu0 0.0
  %355 = vmatprep.mubr.f32.mxu0 0.0
  %356 = vmatmul.mubr.f32.gmra.mrb[0].mxu0 %v27
  %v357 = vpop.f32.mrb[0].mxu0
  %v358 = vadd.f32 0.0, %v357
  %v359 = vpop.f32.mrb[0].mxu0
  %360 = vmatprep.mubr.f32.mxu0 0.0
  %361 = vmatmul.mubr.f32.gmra.mrb[0].mxu0 %v30
  %v362 = vpop.f32.mrb[0].mxu0
  %v363 = vadd.f32 0.0, %v362
  %v364 = vpop.f32.mrb[0].mxu0
  %365 = vdwg.mxu0
  %v366 = vmax.f32 %v279, %v358
  %v367 = vmax.f32 %v280, %v363
  %v368 = vld [vmem:[%s2] sm:$0xff]
  %v369 = vld [vmem:[%s2 + $0x8] sm:$0xff]
  %371 = vset.pattern.permute.xlu0 0
  %372 = vperm.xlu0 %371, %v368
  %v373 = vpop.permute.xlu0 %372
  %376 = vset.pattern.permute.xlu0 0
  %377 = vperm.xlu0 %376, %v369
  %v378 = vpop.permute.xlu0 %377
  %v380 = vadd.f32 %v366, %v373
  %v381 = vadd.f32 %v367, %v378
  %v382 = vmax.f32 %v380, 0.0
  %v383 = vmax.f32 %v381, 0.0
  %384 = vst [vmem:[%s3] sm:$0xff] %v382
  %385 = vst [vmem:[%s3 + $0x8] sm:$0xff] %v383
  // Predicated region
  $region14: #{_lambda_.4} parent=0 // pred_check
    _
  $region15: #{_lambda_.4} parent=0 // pred_check_branch
    %387 = sbr.rel (0) target = $region17
  $region16: #{_lambda_.4} parent=0 // pred_region
    _
  $region17: #{_lambda_.4} parent=0 // pred_fallthru
    _
  // Predicated region
  $region18: #{_lambda_.4} parent=0 // pred_check
    _
  $region19: #{_lambda_.4} parent=0 // pred_check_branch
    %389 = sbr.rel (0) target = $region21
  $region20: #{_lambda_.4} parent=0 // pred_region
    _
  $region21: #{_lambda_.4} parent=0 // pred_fallthru
    _

// kernel: _lambda_.5
$region0: #{_lambda_.5}
  #allocation0 [shape = 'u32[]', space=smem, size = 0x4, offset = 0x4, fixed_abs, tag = 'smem constant byte address 0x4 - core index']
  #allocation1 [shape = 'u32[144,128]{1,0:T(1,128)}', space=vmem, size = 0x12000, scoped, tag = 'internal scratch']
  %s0 = inlined_call_operand.vmem [shape: f32[16,400], index: 0, kind: input, shape index: {}]
  %s1 = inlined_call_operand.vmem [shape: f32[400,128], index: 1, kind: input, shape index: {}]
  %s2 = inlined_call_operand.vmem [shape: f32[16,1], index: 2, kind: input, shape index: {}]
  %s3 = inlined_call_operand.vmem [shape: f32[16,128], index: 3, kind: output, shape index: {}]
  %s4 = sld [smem:[#allocation0]]
  $region22: #{_lambda_.5} parent=0
    _
  %s6 = ssub.s32 1, %s4
  %s7 = scalar_select 0, %s6, %s4
  // Predicated region
  $region2: #{_lambda_.5} parent=0 // pred_check
    _
  $region3: #{_lambda_.5} parent=0 // pred_check_branch
    %9 = sbr.rel (0) target = $region5
  $region4: #{_lambda_.5} parent=0 // pred_region
    _
  $region5: #{_lambda_.5} parent=0 // pred_fallthru
    _
  // Predicated region
  $region6: #{_lambda_.5} parent=0 // pred_check
    _
  $region7: #{_lambda_.5} parent=0 // pred_check_branch
    %11 = sbr.rel (0) target = $region9
  $region8: #{_lambda_.5} parent=0 // pred_region
    _
  $region9: #{_lambda_.5} parent=0 // pred_fallthru
    _
  // Predicated region
  $region10: #{_lambda_.5} parent=0 // pred_check
    _
  $region11: #{_lambda_.5} parent=0 // pred_check_branch
    %13 = sbr.rel (0) target = $region13
  $region12: #{_lambda_.5} parent=0 // pred_region
    _
  $region13: #{_lambda_.5} parent=0 // pred_fallthru
    _
  %v14 = vld [vmem:[%s0] sm:$0xff]
  %v15 = vld [vmem:[%s0 + $0x8] sm:$0xff]
  %v16 = vld [vmem:[%s0 + $0x10] sm:$0xff]
  %v17 = vld [vmem:[%s0 + $0x18] sm:$0xff]
  %v18 = vld [vmem:[%s0 + $0x20] sm:$0xff]
  %v19 = vld [vmem:[%s0 + $0x28] sm:$0xff]
  %v20 = vld [vmem:[%s0 + $0x30] sm:$0xff]
  %v21 = vld [vmem:[%s0 + $0x38] sm:$0xff]
  %v22 = vld [vmem:[%s1] sm:$0xff]
  %v23 = vld [vmem:[%s1 + $0x8] sm:$0xff]
  %v24 = vld [vmem:[%s1 + $0x10] sm:$0xff]
  %v25 = vld [vmem:[%s1 + $0x18] sm:$0xff]
  %v26 = vld [vmem:[%s1 + $0x20] sm:$0xff]
  %v27 = vld [vmem:[%s1 + $0x28] sm:$0xff]
  %v28 = vld [vmem:[%s1 + $0x30] sm:$0xff]
  %v29 = vld [vmem:[%s1 + $0x38] sm:$0xff]
  %v30 = vld [vmem:[%s1 + $0x40] sm:$0xff]
  %v31 = vld [vmem:[%s1 + $0x48] sm:$0xff]
  %v32 = vld [vmem:[%s1 + $0x50] sm:$0xff]
  %v33 = vld [vmem:[%s1 + $0x58] sm:$0xff]
  %v34 = vld [vmem:[%s1 + $0x60] sm:$0xff]
  %v35 = vld [vmem:[%s1 + $0x68] sm:$0xff]
  %v36 = vld [vmem:[%s1 + $0x70] sm:$0xff]
  %v37 = vld [vmem:[%s1 + $0x78] sm:$0xff]
  %v38 = vld [vmem:[%s1 + $0x80] sm:$0xff]
  %v39 = vld [vmem:[%s1 + $0x88] sm:$0xff]
  %v40 = vld [vmem:[%s1 + $0x90] sm:$0xff]
  %v41 = vld [vmem:[%s1 + $0x98] sm:$0xff]
  %v42 = vld [vmem:[%s1 + $0xa0] sm:$0xff]
  %v43 = vld [vmem:[%s1 + $0xa8] sm:$0xff]
  %v44 = vld [vmem:[%s1 + $0xb0] sm:$0xff]
  %v45 = vld [vmem:[%s1 + $0xb8] sm:$0xff]
  %v46 = vld [vmem:[%s1 + $0xc0] sm:$0xff]
  %v47 = vld [vmem:[%s1 + $0xc8] sm:$0xff]
  %v48 = vld [vmem:[%s1 + $0xd0] sm:$0xff]
  %v49 = vld [vmem:[%s1 + $0xd8] sm:$0xff]
  %v50 = vld [vmem:[%s1 + $0xe0] sm:$0xff]
  %v51 = vld [vmem:[%s1 + $0xe8] sm:$0xff]
  %v52 = vld [vmem:[%s1 + $0xf0] sm:$0xff]
  %v53 = vld [vmem:[%s1 + $0xf8] sm:$0xff]
  %v54 = vld [vmem:[%s1 + $0x100] sm:$0xff]
  %v55 = vld [vmem:[%s1 + $0x108] sm:$0xff]
  %v56 = vld [vmem:[%s1 + $0x110] sm:$0xff]
  %v57 = vld [vmem:[%s1 + $0x118] sm:$0xff]
  %v58 = vld [vmem:[%s1 + $0x120] sm:$0xff]
  %v59 = vld [vmem:[%s1 + $0x128] sm:$0xff]
  %v60 = vld [vmem:[%s1 + $0x130] sm:$0xff]
  %v61 = vld [vmem:[%s1 + $0x138] sm:$0xff]
  %v62 = vld [vmem:[%s1 + $0x140] sm:$0xff]
  %v63 = vld [vmem:[%s1 + $0x148] sm:$0xff]
  %v64 = vld [vmem:[%s1 + $0x150] sm:$0xff]
  %v65 = vld [vmem:[%s1 + $0x158] sm:$0xff]
  %v66 = vld [vmem:[%s1 + $0x160] sm:$0xff]
  %v67 = vld [vmem:[%s1 + $0x168] sm:$0xff]
  %v68 = vld [vmem:[%s1 + $0x170] sm:$0xff]
  %v69 = vld [vmem:[%s1 + $0x178] sm:$0xff]
  %v70 = vld [vmem:[%s1 + $0x180] sm:$0xff]
  %v71 = vld [vmem:[%s1 + $0x188] sm:$0xff]
  %v72 = vld [vmem:[%s2] sm:$0xff]
  %v73 = vld [vmem:[%s2 + $0x8] sm:$0xff]
  %75 = vset.pattern.permute.xlu0 0
  %76 = vperm.xlu0 %75, %v72
  %v77 = vpop.permute.xlu0 %76
  %80 = vset.pattern.permute.xlu0 0
  %81 = vperm.xlu0 %80, %v73
  %v82 = vpop.permute.xlu0 %81
  %vm84 = vcmask 130048
  %v86 = vsel %vm84, %v17, 0
  %v89 = vsel %vm84, %v21, 0
  %91 = vmatprep.subr.mxu0 0.0
  %92 = vmatpush1.msra.mxu0 %v22
  %93 = vmatprep.subr.mxu0 0.0
  %94 = vmatpush1.msra.mxu0 %v23
  %95 = vmatprep.subr.mxu0 0.0
  %96 = vmatpush1.msra.mxu0 %v24
  %97 = vmatprep.subr.mxu0 0.0
  %98 = vmatpush1.msra.mxu0 %v25
  %99 = vmatprep.subr.mxu0 0.0
  %100 = vmatpush1.msra.mxu0 %v26
  %101 = vmatprep.subr.mxu0 0.0
  %102 = vmatpush1.msra.mxu0 %v27
  %103 = vmatprep.subr.mxu0 0.0
  %104 = vmatpush1.msra.mxu0 %v28
  %105 = vmatprep.subr.mxu0 0.0
  %106 = vmatpush1.msra.mxu0 %v29
  %107 = vmatprep.subr.mxu0 0.0
  %108 = vmatpush1.msra.mxu0 %v30
  %109 = vmatprep.subr.mxu0 0.0
  %110 = vmatpush1.msra.mxu0 %v31
  %111 = vmatprep.subr.mxu0 0.0
  %112 = vmatpush1.msra.mxu0 %v32
  %113 = vmatprep.subr.mxu0 0.0
  %114 = vmatpush1.msra.mxu0 %v33
  %115 = vmatprep.subr.mxu0 0.0
  %116 = vmatpush1.msra.mxu0 %v34
  %117 = vmatprep.subr.mxu0 0.0
  %118 = vmatpush1.msra.mxu0 %v35
  %119 = vmatprep.subr.mxu0 0.0
  %120 = vmatpush1.msra.mxu0 %v36
  %121 = vmatprep.subr.mxu0 0.0
  %122 = vmatpush1.msra.mxu0 %v37
  %123 = vmatprep.subr.mxu0 0.0
  %124 = vmatpush1.msra.mxu0 %v38
  %125 = vmatprep.subr.mxu0 0.0
  %126 = vmatpush1.msra.mxu0 %v39
  %127 = vmatprep.subr.mxu0 0.0
  %128 = vmatpush1.msra.mxu0 %v40
  %129 = vmatprep.subr.mxu0 0.0
  %130 = vmatpush1.msra.mxu0 %v41
  %131 = vmatprep.subr.mxu0 0.0
  %132 = vmatpush1.msra.mxu0 %v42
  %133 = vmatprep.subr.mxu0 0.0
  %134 = vmatpush1.msra.mxu0 %v43
  %135 = vmatprep.subr.mxu0 0.0
  %136 = vmatpush1.msra.mxu0 %v44
  %137 = vmatprep.subr.mxu0 0.0
  %138 = vmatpush1.msra.mxu0 %v45
  %139 = vmatprep.subr.mxu0 0.0
  %140 = vmatpush1.msra.mxu0 %v46
  %141 = vmatprep.subr.mxu0 0.0
  %142 = vmatpush1.msra.mxu0 %v47
  %143 = vmatprep.subr.mxu0 0.0
  %144 = vmatpush1.msra.mxu0 %v48
  %145 = vmatprep.subr.mxu0 0.0
  %146 = vmatpush1.msra.mxu0 %v49
  %147 = vmatprep.subr.mxu0 0.0
  %148 = vmatpush1.msra.mxu0 %v50
  %149 = vmatprep.subr.mxu0 0.0
  %150 = vmatpush1.msra.mxu0 %v51
  %151 = vmatprep.subr.mxu0 0.0
  %152 = vmatpush1.msra.mxu0 %v52
  %153 = vmatprep.subr.mxu0 0.0
  %154 = vmatpush1.msra.mxu0 %v53
  %155 = vmatprep.mubr.f32.mxu0 %v15
  %156 = vmatmul.mubr.f32.gmra.mrb[0].mxu0 %v14
  %v157 = vpop.f32.mrb[0].mxu0
  %v158 = vadd.f32 %v77, %v157
  %v159 = vpop.f32.mrb[0].mxu0
  %160 = vmatprep.mubr.f32.mxu0 %v19
  %161 = vmatmul.mubr.f32.gmra.mrb[0].mxu0 %v18
  %v162 = vpop.f32.mrb[0].mxu0
  %v163 = vadd.f32 %v82, %v162
  %v164 = vpop.f32.mrb[0].mxu0
  %165 = vdwg.mxu0
  %166 = vmatprep.subr.mxu0 0.0
  %167 = vmatpush1.msra.mxu0 %v54
  %168 = vmatprep.subr.mxu0 0.0
  %169 = vmatpush1.msra.mxu0 %v55
  %170 = vmatprep.subr.mxu0 0.0
  %171 = vmatpush1.msra.mxu0 %v56
  %172 = vmatprep.subr.mxu0 0.0
  %173 = vmatpush1.msra.mxu0 %v57
  %174 = vmatprep.subr.mxu0 0.0
  %175 = vmatpush1.msra.mxu0 %v58
  %176 = vmatprep.subr.mxu0 0.0
  %177 = vmatpush1.msra.mxu0 %v59
  %178 = vmatprep.subr.mxu0 0.0
  %179 = vmatpush1.msra.mxu0 %v60
  %180 = vmatprep.subr.mxu0 0.0
  %181 = vmatpush1.msra.mxu0 %v61
  %182 = vmatprep.subr.mxu0 0.0
  %183 = vmatpush1.msra.mxu0 %v62
  %184 = vmatprep.subr.mxu0 0.0
  %185 = vmatpush1.msra.mxu0 %v63
  %186 = vmatprep.subr.mxu0 0.0
  %187 = vmatpush1.msra.mxu0 %v64
  %188 = vmatprep.subr.mxu0 0.0
  %189 = vmatpush1.msra.mxu0 %v65
  %190 = vmatprep.subr.mxu0 0.0
  %191 = vmatpush1.msra.mxu0 %v66
  %192 = vmatprep.subr.mxu0 0.0
  %193 = vmatpush1.msra.mxu0 %v67
  %194 = vmatprep.subr.mxu0 0.0
  %195 = vmatpush1.msra.mxu0 %v68
  %196 = vmatprep.subr.mxu0 0.0
  %197 = vmatpush1.msra.mxu0 %v69
  %198 = vmatprep.subr.mxu0 0.0
  %199 = vmatpush1.msra.mxu0 %v70
  %200 = vmatprep.subr.mxu0 0.0
  %201 = vmatpush1.msra.mxu0 %v71
  %202 = vmatprep.subr.mxu0 0.0
  %203 = vmatpush1.msra.mxu0 0.0
  %204 = vmatprep.subr.mxu0 0.0
  %205 = vmatpush1.msra.mxu0 0.0
  %206 = vmatprep.subr.mxu0 0.0
  %207 = vmatpush1.msra.mxu0 0.0
  %208 = vmatprep.subr.mxu0 0.0
  %209 = vmatpush1.msra.mxu0 0.0
  %210 = vmatprep.subr.mxu0 0.0
  %211 = vmatpush1.msra.mxu0 0.0
  %212 = vmatprep.subr.mxu0 0.0
  %213 = vmatpush1.msra.mxu0 0.0
  %214 = vmatprep.subr.mxu0 0.0
  %215 = vmatpush1.msra.mxu0 0.0
  %216 = vmatprep.subr.mxu0 0.0
  %217 = vmatpush1.msra.mxu0 0.0
  %218 = vmatprep.subr.mxu0 0.0
  %219 = vmatpush1.msra.mxu0 0.0
  %220 = vmatprep.subr.mxu0 0.0
  %221 = vmatpush1.msra.mxu0 0.0
  %222 = vmatprep.subr.mxu0 0.0
  %223 = vmatpush1.msra.mxu0 0.0
  %224 = vmatprep.subr.mxu0 0.0
  %225 = vmatpush1.msra.mxu0 0.0
  %226 = vmatprep.subr.mxu0 0.0
  %227 = vmatpush1.msra.mxu0 0.0
  %228 = vmatprep.subr.mxu0 0.0
  %229 = vmatpush1.msra.mxu0 0.0
  %230 = vmatprep.mubr.f32.mxu0 %v86
  %231 = vmatmul.mubr.f32.gmra.mrb[0].mxu0 %v16
  %v232 = vpop.f32.mrb[0].mxu0
  %v233 = vadd.f32 %v158, %v232
  %v234 = vpop.f32.mrb[0].mxu0
  %235 = vmatprep.mubr.f32.mxu0 %v89
  %236 = vmatmul.mubr.f32.gmra.mrb[0].mxu0 %v20
  %v237 = vpop.f32.mrb[0].mxu0
  %v238 = vadd.f32 %v163, %v237
  %v239 = vpop.f32.mrb[0].mxu0
  %240 = vdwg.mxu0
  %241 = vst [vmem:[%s3] sm:$0xff] %v233
  %242 = vst [vmem:[%s3 + $0x8] sm:$0xff] %v238
  // Predicated region
  $region14: #{_lambda_.5} parent=0 // pred_check
    _
  $region15: #{_lambda_.5} parent=0 // pred_check_branch
    %244 = sbr.rel (0) target = $region17
  $region16: #{_lambda_.5} parent=0 // pred_region
    _
  $region17: #{_lambda_.5} parent=0 // pred_fallthru
    _
  // Predicated region
  $region18: #{_lambda_.5} parent=0 // pred_check
    _
  $region19: #{_lambda_.5} parent=0 // pred_check_branch
    %246 = sbr.rel (0) target = $region21
  $region20: #{_lambda_.5} parent=0 // pred_region
    _
  $region21: #{_lambda_.5} parent=0 // pred_fallthru
    _

</llo_original>
